<compile_context>
chip_gen: v5e
topology: v5e:2x2
jax: 0.10.0
libtpu: 0.0.40
codegen_flags: <defaults>
</compile_context>

<pallas_src>
import numpy as np
import jax
import jax.numpy as jnp
from jax.experimental import pallas as pl
from jax.experimental.pallas import tpu as pltpu


H_PAD = 128      # hidden padded to one full lane width
IN_PAD = 128     # input_size padded to one full lane width
OUT_PAD = 128    # output_size padded to one full lane width


def lstm_kernel(x_ref, wih_ref, whh_ref, b_ref, wlin_ref, blin_ref, out_ref):
    """Full LSTM recurrence + final Linear, everything resident in VMEM.

    x_ref    : (T, IN_PAD)        time-major input, zero-padded lanes
    wih_ref  : (IN_PAD, 4*H_PAD)  gate-concatenated input weights  [i, f, o, g]
    whh_ref  : (H_PAD, 4*H_PAD)   gate-concatenated recurrent weights
    b_ref    : (1, 4*H_PAD)       b_ih + b_hh, gate-concatenated
    wlin_ref : (H_PAD, OUT_PAD)   final Linear weight
    blin_ref : (1, OUT_PAD)       final Linear bias
    out_ref  : (1, OUT_PAD)
    """
    seq_len = x_ref.shape[0]
    hp = whh_ref.shape[0]

    # Hoisted input projection: ONE (T, IN)x(IN, 4H) matmul + bias add for the
    # whole sequence, done outside the serial recurrence.
    pre = (jnp.dot(x_ref[...], wih_ref[...], preferred_element_type=jnp.float32)
           + b_ref[...])                                    # (T, 4*H_PAD)

    whh = whh_ref[...]                                      # (H_PAD, 4*H_PAD)

    h = jnp.zeros((1, hp), jnp.float32)
    c = jnp.zeros((1, hp), jnp.float32)

    # seq_len is a tiny compile-time constant: fully unroll so the scheduler
    # can overlap step t's EUP/VPU work with step t+1's MXU push, and all
    # slicing below is static (zero-cost).
    for t in range(seq_len):
        # single fused recurrent matmul per step: (1,128) x (128,512)
        z = pre[t:t + 1, :] + jnp.dot(h, whh, preferred_element_type=jnp.float32)

        # gates packed as [i, f, o, g]: sigmoid on one contiguous 3H slab,
        # tanh on the trailing H slab (both lane-aligned multiples of 128).
        s = jax.nn.sigmoid(z[:, :3 * hp])                   # (1, 3*H_PAD)
        g = jnp.tanh(z[:, 3 * hp:])                         # (1, H_PAD)
        i_g = s[:, 0 * hp:1 * hp]
        f_g = s[:, 1 * hp:2 * hp]
        o_g = s[:, 2 * hp:3 * hp]

        c = f_g * c + i_g * g
        h = o_g * jnp.tanh(c)

    # final Linear on the last hidden state == predictions[-1]
    out_ref[...] = (jnp.dot(h, wlin_ref[...], preferred_element_type=jnp.float32)
                    + blin_ref[...])


def lstm_forward(x_pad, wih, whh, b, wlin, blin, output_size):
    seq_len, in_pad = x_pad.shape
    hp = whh.shape[0]
    out_pad = wlin.shape[1]

    flops = int(2 * seq_len * in_pad * 4 * hp            # hoisted input projection
                + 2 * seq_len * hp * 4 * hp              # recurrent matmuls
                + 2 * hp * out_pad)                      # final linear
    transcendentals = int(seq_len * (4 * hp + hp))       # gate acts + tanh(c)
    bytes_accessed = int(sum(a.size * a.dtype.itemsize
                             for a in (x_pad, wih, whh, b, wlin, blin))
                         + out_pad * 4)

    vmem = pl.BlockSpec(memory_space=pltpu.MemorySpace.VMEM)
    out = pl.pallas_call(
        lstm_kernel,
        out_shape=jax.ShapeDtypeStruct((1, out_pad), jnp.float32),
        in_specs=[vmem] * 6,
        out_specs=vmem,
        cost_estimate=pl.CostEstimate(flops=flops,
                                      transcendentals=transcendentals,
                                      bytes_accessed=bytes_accessed),
    )(x_pad, wih, whh, b, wlin, blin)
    return out[0, :output_size]


def make_params(key, input_size, hidden, output_size,
                *, in_pad=IN_PAD, h_pad=H_PAD, out_pad=OUT_PAD):
    # PyTorch-style init: U(-1/sqrt(H), 1/sqrt(H)) for LSTM and Linear params.
    k = 1.0 / np.sqrt(hidden)
    ks = jax.random.split(key, 6)
    w_ih = jax.random.uniform(ks[0], (4 * hidden, input_size), jnp.float32, -k, k)
    w_hh = jax.random.uniform(ks[1], (4 * hidden, hidden), jnp.float32, -k, k)
    b_ih = jax.random.uniform(ks[2], (4 * hidden,), jnp.float32, -k, k)
    b_hh = jax.random.uniform(ks[3], (4 * hidden,), jnp.float32, -k, k)
    w_lin = jax.random.uniform(ks[4], (output_size, hidden), jnp.float32, -k, k)
    b_lin = jax.random.uniform(ks[5], (output_size,), jnp.float32, -k, k)

    # PyTorch gate order is (i, f, g, o); repack to (i, f, o, g) so the three
    # sigmoid gates are lane-contiguous. Transpose for x @ W, concatenate the
    # gates along the lane axis, and zero-pad everything to (8,128)-aligned
    # shapes (pad rows/cols strictly zero -> math unchanged).
    order = (0, 1, 3, 2)  # i, f, o, g

    def pack_w(w, rows_real, rows_pad):
        out = np.zeros((rows_pad, 4 * h_pad), np.float32)
        for slot, gi in enumerate(order):
            gmat = np.asarray(w[gi * hidden:(gi + 1) * hidden, :]).T  # (rows_real, hidden)
            out[:rows_real, slot * h_pad: slot * h_pad + hidden] = gmat
        return jnp.asarray(out)

    wih = pack_w(w_ih, input_size, in_pad)      # (IN_PAD, 4*H_PAD)
    whh = pack_w(w_hh, hidden, h_pad)           # (H_PAD, 4*H_PAD)

    b_all = np.asarray(b_ih + b_hh)
    b_cat = np.zeros((1, 4 * h_pad), np.float32)
    for slot, gi in enumerate(order):
        b_cat[0, slot * h_pad: slot * h_pad + hidden] = b_all[gi * hidden:(gi + 1) * hidden]
    bias = jnp.asarray(b_cat)                   # (1, 4*H_PAD)

    wlin_p = np.zeros((h_pad, out_pad), np.float32)
    wlin_p[:hidden, :output_size] = np.asarray(w_lin).T
    blin_p = np.zeros((1, out_pad), np.float32)
    blin_p[0, :output_size] = np.asarray(b_lin)

    packed = (wih, whh, bias, jnp.asarray(wlin_p), jnp.asarray(blin_p))
    raw = (w_ih, w_hh, b_ih, b_hh, w_lin, b_lin)
    return packed, raw


def reference_forward(x, raw_params):
    # Pure-JAX reference matching torch.nn.LSTM + Linear semantics (B=1).
    w_ih, w_hh, b_ih, b_hh, w_lin, b_lin = raw_params
    hidden = w_hh.shape[1]
    h = jnp.zeros((hidden,), jnp.float32)
    c = jnp.zeros((hidden,), jnp.float32)
    for t in range(x.shape[0]):
        gates = w_ih @ x[t] + b_ih + w_hh @ h + b_hh
        i = jax.nn.sigmoid(gates[0 * hidden:1 * hidden])
        f = jax.nn.sigmoid(gates[1 * hidden:2 * hidden])
        g = jnp.tanh(gates[2 * hidden:3 * hidden])
        o = jax.nn.sigmoid(gates[3 * hidden:4 * hidden])
        c = f * c + i * g
        h = o * jnp.tanh(c)
    return w_lin @ h + b_lin


if __name__ == "__main__":
    input_size = 1
    output_size = 1
    hidden_layer_size = 100   # module default
    seq_len = 8

    key = jax.random.PRNGKey(0)
    kx, kp = jax.random.split(key)
    x = jax.random.normal(kx, (seq_len, input_size), jnp.float32)

    packed, raw = make_params(kp, input_size, hidden_layer_size, output_size)
    wih, whh, bias, wlin, blin = packed

    # lane-pad the input (time axis untouched: recurrence length must not change)
    x_pad = jnp.zeros((seq_len, IN_PAD), jnp.float32).at[:, :input_size].set(x)

    pred = lstm_forward(x_pad, wih, whh, bias, wlin, blin, output_size)
    pred = jax.block_until_ready(pred)

    ref = reference_forward(x, raw)
    np.testing.assert_allclose(np.asarray(pred), np.asarray(ref), rtol=1e-5, atol=1e-5)

    print("KERNEL_OK")
</pallas_src>

<mosaic_0001>
module attributes {stable_mosaic.version = 11 : i64} {
  func.func @lstm_kernel(%arg0: memref<8x128xf32, #tpu.memory_space<vmem>>, %arg1: memref<128x512xf32, #tpu.memory_space<vmem>>, %arg2: memref<128x512xf32, #tpu.memory_space<vmem>>, %arg3: memref<1x512xf32, #tpu.memory_space<vmem>>, %arg4: memref<128x128xf32, #tpu.memory_space<vmem>>, %arg5: memref<1x128xf32, #tpu.memory_space<vmem>>, %arg6: memref<1x128xf32, #tpu.memory_space<vmem>>) attributes {dimension_semantics = [], scalar_prefetch = 0 : i64, scratch_operands = 0 : i64, tpu.core_type = #tpu.core_type<tc>} {
    %c0 = arith.constant 0 : index
    %c0_0 = arith.constant 0 : index
    %0 = vector.load %arg0[%c0, %c0_0] : memref<8x128xf32, #tpu.memory_space<vmem>>, vector<8x128xf32>
    %c0_1 = arith.constant 0 : index
    %c0_2 = arith.constant 0 : index
    %1 = vector.load %arg1[%c0_1, %c0_2] : memref<128x512xf32, #tpu.memory_space<vmem>>, vector<128x512xf32>
    %cst = arith.constant dense<0.000000e+00> : vector<8x512xf32>
    %2 = tpu.matmul %0, %1, %cst {dimension_numbers = #tpu.dot_dimension_numbers<[1], [0], [0], [1], [0, 0, 1, 1], [], []>} : vector<8x128xf32>, vector<128x512xf32>, vector<8x512xf32> -> vector<8x512xf32>
    %c0_3 = arith.constant 0 : index
    %c0_4 = arith.constant 0 : index
    %3 = vector.load %arg3[%c0_3, %c0_4] : memref<1x512xf32, #tpu.memory_space<vmem>>, vector<1x512xf32>
    %4 = vector.broadcast %3 : vector<1x512xf32> to vector<8x512xf32>
    %5 = arith.addf %2, %4 : vector<8x512xf32>
    %c0_5 = arith.constant 0 : index
    %c0_6 = arith.constant 0 : index
    %6 = vector.load %arg2[%c0_5, %c0_6] : memref<128x512xf32, #tpu.memory_space<vmem>>, vector<128x512xf32>
    %cst_7 = arith.constant 0.000000e+00 : f32
    %7 = vector.broadcast %cst_7 : f32 to vector<1x128xf32>
    %cst_8 = arith.constant 0.000000e+00 : f32
    %8 = vector.broadcast %cst_8 : f32 to vector<1x128xf32>
    %9 = vector.extract_strided_slice %5 {offsets = [0, 0], sizes = [1, 512], strides = [1, 1]} : vector<8x512xf32> to vector<1x512xf32>
    %cst_9 = arith.constant dense<0.000000e+00> : vector<1x512xf32>
    %10 = tpu.matmul %7, %6, %cst_9 {dimension_numbers = #tpu.dot_dimension_numbers<[1], [0], [0], [1], [0, 0, 1, 1], [], []>} : vector<1x128xf32>, vector<128x512xf32>, vector<1x512xf32> -> vector<1x512xf32>
    %11 = arith.addf %9, %10 : vector<1x512xf32>
    %12 = vector.extract_strided_slice %11 {offsets = [0, 0], sizes = [1, 384], strides = [1, 1]} : vector<1x512xf32> to vector<1x384xf32>
    %13 = arith.negf %12 : vector<1x384xf32>
    %14 = math.exp %13 : vector<1x384xf32>
    %cst_10 = arith.constant 1.000000e+00 : f32
    %15 = vector.broadcast %cst_10 : f32 to vector<1x384xf32>
    %16 = arith.addf %15, %14 : vector<1x384xf32>
    %17 = arith.divf %15, %16 : vector<1x384xf32>
    %18 = vector.extract_strided_slice %11 {offsets = [0, 384], sizes = [1, 128], strides = [1, 1]} : vector<1x512xf32> to vector<1x128xf32>
    %19 = math.tanh %18 : vector<1x128xf32>
    %20 = vector.extract_strided_slice %17 {offsets = [0, 0], sizes = [1, 128], strides = [1, 1]} : vector<1x384xf32> to vector<1x128xf32>
    %21 = vector.extract_strided_slice %17 {offsets = [0, 128], sizes = [1, 128], strides = [1, 1]} : vector<1x384xf32> to vector<1x128xf32>
    %22 = vector.extract_strided_slice %17 {offsets = [0, 256], sizes = [1, 128], strides = [1, 1]} : vector<1x384xf32> to vector<1x128xf32>
    %23 = arith.mulf %21, %8 : vector<1x128xf32>
    %24 = arith.mulf %20, %19 : vector<1x128xf32>
    %25 = arith.addf %23, %24 : vector<1x128xf32>
    %26 = math.tanh %25 : vector<1x128xf32>
    %27 = arith.mulf %22, %26 : vector<1x128xf32>
    %28 = vector.extract_strided_slice %5 {offsets = [1, 0], sizes = [1, 512], strides = [1, 1]} : vector<8x512xf32> to vector<1x512xf32>
    %cst_11 = arith.constant dense<0.000000e+00> : vector<1x512xf32>
    %29 = tpu.matmul %27, %6, %cst_11 {dimension_numbers = #tpu.dot_dimension_numbers<[1], [0], [0], [1], [0, 0, 1, 1], [], []>} : vector<1x128xf32>, vector<128x512xf32>, vector<1x512xf32> -> vector<1x512xf32>
    %30 = arith.addf %28, %29 : vector<1x512xf32>
    %31 = vector.extract_strided_slice %30 {offsets = [0, 0], sizes = [1, 384], strides = [1, 1]} : vector<1x512xf32> to vector<1x384xf32>
    %32 = arith.negf %31 : vector<1x384xf32>
    %33 = math.exp %32 : vector<1x384xf32>
    %cst_12 = arith.constant 1.000000e+00 : f32
    %34 = vector.broadcast %cst_12 : f32 to vector<1x384xf32>
    %35 = arith.addf %34, %33 : vector<1x384xf32>
    %36 = arith.divf %34, %35 : vector<1x384xf32>
    %37 = vector.extract_strided_slice %30 {offsets = [0, 384], sizes = [1, 128], strides = [1, 1]} : vector<1x512xf32> to vector<1x128xf32>
    %38 = math.tanh %37 : vector<1x128xf32>
    %39 = vector.extract_strided_slice %36 {offsets = [0, 0], sizes = [1, 128], strides = [1, 1]} : vector<1x384xf32> to vector<1x128xf32>
    %40 = vector.extract_strided_slice %36 {offsets = [0, 128], sizes = [1, 128], strides = [1, 1]} : vector<1x384xf32> to vector<1x128xf32>
    %41 = vector.extract_strided_slice %36 {offsets = [0, 256], sizes = [1, 128], strides = [1, 1]} : vector<1x384xf32> to vector<1x128xf32>
    %42 = arith.mulf %40, %25 : vector<1x128xf32>
    %43 = arith.mulf %39, %38 : vector<1x128xf32>
    %44 = arith.addf %42, %43 : vector<1x128xf32>
    %45 = math.tanh %44 : vector<1x128xf32>
    %46 = arith.mulf %41, %45 : vector<1x128xf32>
    %47 = vector.extract_strided_slice %5 {offsets = [2, 0], sizes = [1, 512], strides = [1, 1]} : vector<8x512xf32> to vector<1x512xf32>
    %cst_13 = arith.constant dense<0.000000e+00> : vector<1x512xf32>
    %48 = tpu.matmul %46, %6, %cst_13 {dimension_numbers = #tpu.dot_dimension_numbers<[1], [0], [0], [1], [0, 0, 1, 1], [], []>} : vector<1x128xf32>, vector<128x512xf32>, vector<1x512xf32> -> vector<1x512xf32>
    %49 = arith.addf %47, %48 : vector<1x512xf32>
    %50 = vector.extract_strided_slice %49 {offsets = [0, 0], sizes = [1, 384], strides = [1, 1]} : vector<1x512xf32> to vector<1x384xf32>
    %51 = arith.negf %50 : vector<1x384xf32>
    %52 = math.exp %51 : vector<1x384xf32>
    %cst_14 = arith.constant 1.000000e+00 : f32
    %53 = vector.broadcast %cst_14 : f32 to vector<1x384xf32>
    %54 = arith.addf %53, %52 : vector<1x384xf32>
    %55 = arith.divf %53, %54 : vector<1x384xf32>
    %56 = vector.extract_strided_slice %49 {offsets = [0, 384], sizes = [1, 128], strides = [1, 1]} : vector<1x512xf32> to vector<1x128xf32>
    %57 = math.tanh %56 : vector<1x128xf32>
    %58 = vector.extract_strided_slice %55 {offsets = [0, 0], sizes = [1, 128], strides = [1, 1]} : vector<1x384xf32> to vector<1x128xf32>
    %59 = vector.extract_strided_slice %55 {offsets = [0, 128], sizes = [1, 128], strides = [1, 1]} : vector<1x384xf32> to vector<1x128xf32>
    %60 = vector.extract_strided_slice %55 {offsets = [0, 256], sizes = [1, 128], strides = [1, 1]} : vector<1x384xf32> to vector<1x128xf32>
    %61 = arith.mulf %59, %44 : vector<1x128xf32>
    %62 = arith.mulf %58, %57 : vector<1x128xf32>
    %63 = arith.addf %61, %62 : vector<1x128xf32>
    %64 = math.tanh %63 : vector<1x128xf32>
    %65 = arith.mulf %60, %64 : vector<1x128xf32>
    %66 = vector.extract_strided_slice %5 {offsets = [3, 0], sizes = [1, 512], strides = [1, 1]} : vector<8x512xf32> to vector<1x512xf32>
    %cst_15 = arith.constant dense<0.000000e+00> : vector<1x512xf32>
    %67 = tpu.matmul %65, %6, %cst_15 {dimension_numbers = #tpu.dot_dimension_numbers<[1], [0], [0], [1], [0, 0, 1, 1], [], []>} : vector<1x128xf32>, vector<128x512xf32>, vector<1x512xf32> -> vector<1x512xf32>
    %68 = arith.addf %66, %67 : vector<1x512xf32>
    %69 = vector.extract_strided_slice %68 {offsets = [0, 0], sizes = [1, 384], strides = [1, 1]} : vector<1x512xf32> to vector<1x384xf32>
    %70 = arith.negf %69 : vector<1x384xf32>
    %71 = math.exp %70 : vector<1x384xf32>
    %cst_16 = arith.constant 1.000000e+00 : f32
    %72 = vector.broadcast %cst_16 : f32 to vector<1x384xf32>
    %73 = arith.addf %72, %71 : vector<1x384xf32>
    %74 = arith.divf %72, %73 : vector<1x384xf32>
    %75 = vector.extract_strided_slice %68 {offsets = [0, 384], sizes = [1, 128], strides = [1, 1]} : vector<1x512xf32> to vector<1x128xf32>
    %76 = math.tanh %75 : vector<1x128xf32>
    %77 = vector.extract_strided_slice %74 {offsets = [0, 0], sizes = [1, 128], strides = [1, 1]} : vector<1x384xf32> to vector<1x128xf32>
    %78 = vector.extract_strided_slice %74 {offsets = [0, 128], sizes = [1, 128], strides = [1, 1]} : vector<1x384xf32> to vector<1x128xf32>
    %79 = vector.extract_strided_slice %74 {offsets = [0, 256], sizes = [1, 128], strides = [1, 1]} : vector<1x384xf32> to vector<1x128xf32>
    %80 = arith.mulf %78, %63 : vector<1x128xf32>
    %81 = arith.mulf %77, %76 : vector<1x128xf32>
    %82 = arith.addf %80, %81 : vector<1x128xf32>
    %83 = math.tanh %82 : vector<1x128xf32>
    %84 = arith.mulf %79, %83 : vector<1x128xf32>
    %85 = vector.extract_strided_slice %5 {offsets = [4, 0], sizes = [1, 512], strides = [1, 1]} : vector<8x512xf32> to vector<1x512xf32>
    %cst_17 = arith.constant dense<0.000000e+00> : vector<1x512xf32>
    %86 = tpu.matmul %84, %6, %cst_17 {dimension_numbers = #tpu.dot_dimension_numbers<[1], [0], [0], [1], [0, 0, 1, 1], [], []>} : vector<1x128xf32>, vector<128x512xf32>, vector<1x512xf32> -> vector<1x512xf32>
    %87 = arith.addf %85, %86 : vector<1x512xf32>
    %88 = vector.extract_strided_slice %87 {offsets = [0, 0], sizes = [1, 384], strides = [1, 1]} : vector<1x512xf32> to vector<1x384xf32>
    %89 = arith.negf %88 : vector<1x384xf32>
    %90 = math.exp %89 : vector<1x384xf32>
    %cst_18 = arith.constant 1.000000e+00 : f32
    %91 = vector.broadcast %cst_18 : f32 to vector<1x384xf32>
    %92 = arith.addf %91, %90 : vector<1x384xf32>
    %93 = arith.divf %91, %92 : vector<1x384xf32>
    %94 = vector.extract_strided_slice %87 {offsets = [0, 384], sizes = [1, 128], strides = [1, 1]} : vector<1x512xf32> to vector<1x128xf32>
    %95 = math.tanh %94 : vector<1x128xf32>
    %96 = vector.extract_strided_slice %93 {offsets = [0, 0], sizes = [1, 128], strides = [1, 1]} : vector<1x384xf32> to vector<1x128xf32>
    %97 = vector.extract_strided_slice %93 {offsets = [0, 128], sizes = [1, 128], strides = [1, 1]} : vector<1x384xf32> to vector<1x128xf32>
    %98 = vector.extract_strided_slice %93 {offsets = [0, 256], sizes = [1, 128], strides = [1, 1]} : vector<1x384xf32> to vector<1x128xf32>
    %99 = arith.mulf %97, %82 : vector<1x128xf32>
    %100 = arith.mulf %96, %95 : vector<1x128xf32>
    %101 = arith.addf %99, %100 : vector<1x128xf32>
    %102 = math.tanh %101 : vector<1x128xf32>
    %103 = arith.mulf %98, %102 : vector<1x128xf32>
    %104 = vector.extract_strided_slice %5 {offsets = [5, 0], sizes = [1, 512], strides = [1, 1]} : vector<8x512xf32> to vector<1x512xf32>
    %cst_19 = arith.constant dense<0.000000e+00> : vector<1x512xf32>
    %105 = tpu.matmul %103, %6, %cst_19 {dimension_numbers = #tpu.dot_dimension_numbers<[1], [0], [0], [1], [0, 0, 1, 1], [], []>} : vector<1x128xf32>, vector<128x512xf32>, vector<1x512xf32> -> vector<1x512xf32>
    %106 = arith.addf %104, %105 : vector<1x512xf32>
    %107 = vector.extract_strided_slice %106 {offsets = [0, 0], sizes = [1, 384], strides = [1, 1]} : vector<1x512xf32> to vector<1x384xf32>
    %108 = arith.negf %107 : vector<1x384xf32>
    %109 = math.exp %108 : vector<1x384xf32>
    %cst_20 = arith.constant 1.000000e+00 : f32
    %110 = vector.broadcast %cst_20 : f32 to vector<1x384xf32>
    %111 = arith.addf %110, %109 : vector<1x384xf32>
    %112 = arith.divf %110, %111 : vector<1x384xf32>
    %113 = vector.extract_strided_slice %106 {offsets = [0, 384], sizes = [1, 128], strides = [1, 1]} : vector<1x512xf32> to vector<1x128xf32>
    %114 = math.tanh %113 : vector<1x128xf32>
    %115 = vector.extract_strided_slice %112 {offsets = [0, 0], sizes = [1, 128], strides = [1, 1]} : vector<1x384xf32> to vector<1x128xf32>
    %116 = vector.extract_strided_slice %112 {offsets = [0, 128], sizes = [1, 128], strides = [1, 1]} : vector<1x384xf32> to vector<1x128xf32>
    %117 = vector.extract_strided_slice %112 {offsets = [0, 256], sizes = [1, 128], strides = [1, 1]} : vector<1x384xf32> to vector<1x128xf32>
    %118 = arith.mulf %116, %101 : vector<1x128xf32>
    %119 = arith.mulf %115, %114 : vector<1x128xf32>
    %120 = arith.addf %118, %119 : vector<1x128xf32>
    %121 = math.tanh %120 : vector<1x128xf32>
    %122 = arith.mulf %117, %121 : vector<1x128xf32>
    %123 = vector.extract_strided_slice %5 {offsets = [6, 0], sizes = [1, 512], strides = [1, 1]} : vector<8x512xf32> to vector<1x512xf32>
    %cst_21 = arith.constant dense<0.000000e+00> : vector<1x512xf32>
    %124 = tpu.matmul %122, %6, %cst_21 {dimension_numbers = #tpu.dot_dimension_numbers<[1], [0], [0], [1], [0, 0, 1, 1], [], []>} : vector<1x128xf32>, vector<128x512xf32>, vector<1x512xf32> -> vector<1x512xf32>
    %125 = arith.addf %123, %124 : vector<1x512xf32>
    %126 = vector.extract_strided_slice %125 {offsets = [0, 0], sizes = [1, 384], strides = [1, 1]} : vector<1x512xf32> to vector<1x384xf32>
    %127 = arith.negf %126 : vector<1x384xf32>
    %128 = math.exp %127 : vector<1x384xf32>
    %cst_22 = arith.constant 1.000000e+00 : f32
    %129 = vector.broadcast %cst_22 : f32 to vector<1x384xf32>
    %130 = arith.addf %129, %128 : vector<1x384xf32>
    %131 = arith.divf %129, %130 : vector<1x384xf32>
    %132 = vector.extract_strided_slice %125 {offsets = [0, 384], sizes = [1, 128], strides = [1, 1]} : vector<1x512xf32> to vector<1x128xf32>
    %133 = math.tanh %132 : vector<1x128xf32>
    %134 = vector.extract_strided_slice %131 {offsets = [0, 0], sizes = [1, 128], strides = [1, 1]} : vector<1x384xf32> to vector<1x128xf32>
    %135 = vector.extract_strided_slice %131 {offsets = [0, 128], sizes = [1, 128], strides = [1, 1]} : vector<1x384xf32> to vector<1x128xf32>
    %136 = vector.extract_strided_slice %131 {offsets = [0, 256], sizes = [1, 128], strides = [1, 1]} : vector<1x384xf32> to vector<1x128xf32>
    %137 = arith.mulf %135, %120 : vector<1x128xf32>
    %138 = arith.mulf %134, %133 : vector<1x128xf32>
    %139 = arith.addf %137, %138 : vector<1x128xf32>
    %140 = math.tanh %139 : vector<1x128xf32>
    %141 = arith.mulf %136, %140 : vector<1x128xf32>
    %142 = vector.extract_strided_slice %5 {offsets = [7, 0], sizes = [1, 512], strides = [1, 1]} : vector<8x512xf32> to vector<1x512xf32>
    %cst_23 = arith.constant dense<0.000000e+00> : vector<1x512xf32>
    %143 = tpu.matmul %141, %6, %cst_23 {dimension_numbers = #tpu.dot_dimension_numbers<[1], [0], [0], [1], [0, 0, 1, 1], [], []>} : vector<1x128xf32>, vector<128x512xf32>, vector<1x512xf32> -> vector<1x512xf32>
    %144 = arith.addf %142, %143 : vector<1x512xf32>
    %145 = vector.extract_strided_slice %144 {offsets = [0, 0], sizes = [1, 384], strides = [1, 1]} : vector<1x512xf32> to vector<1x384xf32>
    %146 = arith.negf %145 : vector<1x384xf32>
    %147 = math.exp %146 : vector<1x384xf32>
    %cst_24 = arith.constant 1.000000e+00 : f32
    %148 = vector.broadcast %cst_24 : f32 to vector<1x384xf32>
    %149 = arith.addf %148, %147 : vector<1x384xf32>
    %150 = arith.divf %148, %149 : vector<1x384xf32>
    %151 = vector.extract_strided_slice %144 {offsets = [0, 384], sizes = [1, 128], strides = [1, 1]} : vector<1x512xf32> to vector<1x128xf32>
    %152 = math.tanh %151 : vector<1x128xf32>
    %153 = vector.extract_strided_slice %150 {offsets = [0, 0], sizes = [1, 128], strides = [1, 1]} : vector<1x384xf32> to vector<1x128xf32>
    %154 = vector.extract_strided_slice %150 {offsets = [0, 128], sizes = [1, 128], strides = [1, 1]} : vector<1x384xf32> to vector<1x128xf32>
    %155 = vector.extract_strided_slice %150 {offsets = [0, 256], sizes = [1, 128], strides = [1, 1]} : vector<1x384xf32> to vector<1x128xf32>
    %156 = arith.mulf %154, %139 : vector<1x128xf32>
    %157 = arith.mulf %153, %152 : vector<1x128xf32>
    %158 = arith.addf %156, %157 : vector<1x128xf32>
    %159 = math.tanh %158 : vector<1x128xf32>
    %160 = arith.mulf %155, %159 : vector<1x128xf32>
    %c0_25 = arith.constant 0 : index
    %c0_26 = arith.constant 0 : index
    %161 = vector.load %arg4[%c0_25, %c0_26] : memref<128x128xf32, #tpu.memory_space<vmem>>, vector<128x128xf32>
    %cst_27 = arith.constant dense<0.000000e+00> : vector<1x128xf32>
    %162 = tpu.matmul %160, %161, %cst_27 {dimension_numbers = #tpu.dot_dimension_numbers<[1], [0], [0], [1], [0, 0, 1, 1], [], []>} : vector<1x128xf32>, vector<128x128xf32>, vector<1x128xf32> -> vector<1x128xf32>
    %c0_28 = arith.constant 0 : index
    %c0_29 = arith.constant 0 : index
    %163 = vector.load %arg5[%c0_28, %c0_29] : memref<1x128xf32, #tpu.memory_space<vmem>>, vector<1x128xf32>
    %164 = arith.addf %162, %163 : vector<1x128xf32>
    %c0_30 = arith.constant 0 : index
    %c0_31 = arith.constant 0 : index
    %165 = vector.load %arg6[%c0_30, %c0_31] : memref<1x128xf32, #tpu.memory_space<vmem>>, vector<1x128xf32>
    tpu.vector_store %arg6[%c0_30, %c0_31], %164 {strides = array<i32>} : memref<1x128xf32, #tpu.memory_space<vmem>>, vector<1x128xf32>,
    return
  }
}

</mosaic_0001>

<llo_original>
// kernel: tpu_custom_call.1
$region0: #{tpu_custom_call.1}
  #allocation0 [shape = 'u32[]', space=smem, size = 0x4, offset = 0x4, fixed_abs, tag = 'smem constant byte address 0x4 - core index']
  #allocation1 [shape = 'u32[72,128]{1,0:T(1,128)}', space=vmem, size = 0x9000, scoped, tag = 'internal scratch']
  %s0 = inlined_call_operand.hbm [shape: f32[8,128], index: 0, kind: input, shape index: {}]
  %s1 = inlined_call_operand.hbm [shape: f32[128,512], index: 1, kind: input, shape index: {}]
  %s2 = inlined_call_operand.hbm [shape: f32[128,512], index: 2, kind: input, shape index: {}]
  %s3 = inlined_call_operand.hbm [shape: f32[1,512], index: 3, kind: input, shape index: {}]
  %s4 = inlined_call_operand.hbm [shape: f32[128,128], index: 4, kind: input, shape index: {}]
  %s5 = inlined_call_operand.vmem [shape: f32[1,128], index: 5, kind: input, shape index: {}]
  %s6 = inlined_call_operand.hbm [shape: f32[1,128], index: 6, kind: output, shape index: {}]
  %s7 = sld [smem:[#allocation0]]
  $region54: #{tpu_custom_call.1} parent=0
    _
  %s9 = ssub.s32 1, %s7
  %s10 = scalar_select 0, %s9, %s7
  $region1: #{tpu_custom_call.1} parent=0
    #allocation2 [shape = 'u8[4096]{0}', space=vmem, size = 0x1000, scoped, tag = 'input window, operand 0, single buffered']
    #allocation3 [shape = 's32[1]{0}', space=sflag, size = 0x4, scoped, tag = 'scoped memory for tpu_custom_call.1']
    #allocation4 [shape = 's32[1]{0}', space=sflag, size = 0x4, scoped, tag = 'scoped memory for tpu_custom_call.1']
    #allocation5 [shape = 'u8[262144]{0}', space=vmem, size = 0x40000, scoped, tag = 'input window, operand 1, single buffered']
    #allocation6 [shape = 's32[1]{0}', space=sflag, size = 0x4, scoped, tag = 'scoped memory for tpu_custom_call.1']
    #allocation7 [shape = 'u8[262144]{0}', space=vmem, size = 0x40000, scoped, tag = 'input window, operand 2, single buffered']
    #allocation8 [shape = 'u8[2048]{0}', space=vmem, size = 0x800, scoped, tag = 'input window, operand 3, single buffered']
    #allocation9 [shape = 's32[1]{0}', space=sflag, size = 0x4, scoped, tag = 'scoped memory for tpu_custom_call.1']
    #allocation10 [shape = 'u8[65536]{0}', space=vmem, size = 0x10000, scoped, tag = 'input window, operand 4, single buffered']
    #allocation11 [shape = 'u8[512]{0}', space=vmem, size = 0x400, scoped, tag = 'output window, operand 0, single buffered']
    %11 = vsyncpa [#allocation3], 0
    %12 = vsyncpa [#allocation6], 0
    %13 = vsyncpa [#allocation9], 0
    %14 = vsyncpa [#allocation4], 0
    // Predicated region
    $region2: #{tpu_custom_call.1} parent=1 // pred_check
      _
    $region3: #{tpu_custom_call.1} parent=1 // pred_check_branch
      %16 = sbr.rel (0) target = $region5
    $region4: #{tpu_custom_call.1} parent=1 // pred_region
      %18 = vsyncadd [#allocation3], 0
      %s20 = sshll.u32 %s0, 4
      %s21 = int_to_ptr.hbm [resolvable:$true] %s20
      %s22 = sshll.u32 [#allocation2], 4
      %s23 = int_to_ptr.vmem [resolvable:$true] %s22
      %25 = dma.hbm_to_vmem [thread:$0]  %s21, 128, %s23, [#allocation3]
    $region5: #{tpu_custom_call.1} parent=1 // pred_fallthru
      _
    // Predicated region
    $region6: #{tpu_custom_call.1} parent=1 // pred_check
      _
    $region7: #{tpu_custom_call.1} parent=1 // pred_check_branch
      %27 = sbr.rel (0) target = $region9
    $region8: #{tpu_custom_call.1} parent=1 // pred_region
      %29 = vsyncadd [#allocation6], 0
      %s30 = sshll.u32 %s1, 4
      %s31 = int_to_ptr.hbm [resolvable:$true] %s30
      %s32 = sshll.u32 [#allocation5], 4
      %s33 = int_to_ptr.vmem [resolvable:$true] %s32
      %38 = dma.hbm_to_vmem [thread:$0]  %s31, 8192, %s33, [#allocation6], 512, 512, 32
    $region9: #{tpu_custom_call.1} parent=1 // pred_fallthru
      _
    // Predicated region
    $region10: #{tpu_custom_call.1} parent=1 // pred_check
      _
    $region11: #{tpu_custom_call.1} parent=1 // pred_check_branch
      %40 = sbr.rel (0) target = $region13
    $region12: #{tpu_custom_call.1} parent=1 // pred_region
      %42 = vsyncadd [#allocation6], 0
      %s43 = sshll.u32 %s2, 4
      %s44 = int_to_ptr.hbm [resolvable:$true] %s43
      %s45 = sshll.u32 [#allocation7], 4
      %s46 = int_to_ptr.vmem [resolvable:$true] %s45
      %51 = dma.hbm_to_vmem [thread:$0]  %s44, 8192, %s46, [#allocation6], 512, 512, 32
    $region13: #{tpu_custom_call.1} parent=1 // pred_fallthru
      _
    // Predicated region
    $region14: #{tpu_custom_call.1} parent=1 // pred_check
      _
    $region15: #{tpu_custom_call.1} parent=1 // pred_check_branch
      %53 = sbr.rel (0) target = $region17
    $region16: #{tpu_custom_call.1} parent=1 // pred_region
      %55 = vsyncadd [#allocation9], 0
      %s57 = sshll.u32 %s3, 4
      %s58 = int_to_ptr.hbm [resolvable:$true] %s57
      %s59 = sshll.u32 [#allocation8], 4
      %s60 = int_to_ptr.vmem [resolvable:$true] %s59
      %62 = dma.hbm_to_vmem [thread:$0]  %s58, 64, %s60, [#allocation9]
    $region17: #{tpu_custom_call.1} parent=1 // pred_fallthru
      _
    // Predicated region
    $region18: #{tpu_custom_call.1} parent=1 // pred_check
      _
    $region19: #{tpu_custom_call.1} parent=1 // pred_check_branch
      %64 = sbr.rel (0) target = $region21
    $region20: #{tpu_custom_call.1} parent=1 // pred_region
      %66 = vsyncadd [#allocation9], 0
      %s67 = sshll.u32 %s4, 4
      %s68 = int_to_ptr.hbm [resolvable:$true] %s67
      %s69 = sshll.u32 [#allocation10], 4
      %s70 = int_to_ptr.vmem [resolvable:$true] %s69
      %75 = dma.hbm_to_vmem [thread:$0]  %s68, 2048, %s70, [#allocation9], 128, 128, 8
    $region21: #{tpu_custom_call.1} parent=1 // pred_fallthru
      _
    // Predicated region
    $region22: #{tpu_custom_call.1} parent=1 // pred_check
      _
    $region23: #{tpu_custom_call.1} parent=1 // pred_check_branch
      %77 = sbr.rel (0) target = $region25
    $region24: #{tpu_custom_call.1} parent=1 // pred_region
      _
    $region25: #{tpu_custom_call.1} parent=1 // pred_fallthru
      _
    // Predicated region
    $region26: #{tpu_custom_call.1} parent=1 // pred_check
      _
    $region27: #{tpu_custom_call.1} parent=1 // pred_check_branch
      %79 = sbr.rel (0) target = $region29
    $region28: #{tpu_custom_call.1} parent=1 // pred_region
      %81 = dma.done [#allocation3], 128
    $region29: #{tpu_custom_call.1} parent=1 // pred_fallthru
      _
    // Predicated region
    $region30: #{tpu_custom_call.1} parent=1 // pred_check
      _
    $region31: #{tpu_custom_call.1} parent=1 // pred_check_branch
      %83 = sbr.rel (0) target = $region33
    $region32: #{tpu_custom_call.1} parent=1 // pred_region
      %85 = dma.done [#allocation6], 8192
    $region33: #{tpu_custom_call.1} parent=1 // pred_fallthru
      _
    // Predicated region
    $region34: #{tpu_custom_call.1} parent=1 // pred_check
      _
    $region35: #{tpu_custom_call.1} parent=1 // pred_check_branch
      %87 = sbr.rel (0) target = $region37
    $region36: #{tpu_custom_call.1} parent=1 // pred_region
      %89 = dma.done [#allocation6], 8192
    $region37: #{tpu_custom_call.1} parent=1 // pred_fallthru
      _
    // Predicated region
    $region38: #{tpu_custom_call.1} parent=1 // pred_check
      _
    $region39: #{tpu_custom_call.1} parent=1 // pred_check_branch
      %91 = sbr.rel (0) target = $region41
    $region40: #{tpu_custom_call.1} parent=1 // pred_region
      %93 = dma.done [#allocation9], 64
    $region41: #{tpu_custom_call.1} parent=1 // pred_fallthru
      _
    // Predicated region
    $region42: #{tpu_custom_call.1} parent=1 // pred_check
      _
    $region43: #{tpu_custom_call.1} parent=1 // pred_check_branch
      %95 = sbr.rel (0) target = $region45
    $region44: #{tpu_custom_call.1} parent=1 // pred_region
      %97 = dma.done [#allocation9], 2048
    $region45: #{tpu_custom_call.1} parent=1 // pred_fallthru
      _
    %v98 = vld [vmem:[#allocation2] sm:$0xff]
    %v99 = vld [vmem:[#allocation5] sm:$0xff]
    %v100 = vld [vmem:[#allocation5 + $0x8] sm:$0xff]
    %v101 = vld [vmem:[#allocation5 + $0x10] sm:$0xff]
    %v102 = vld [vmem:[#allocation5 + $0x18] sm:$0xff]
    %v103 = vld [vmem:[#allocation5 + $0x20] sm:$0xff]
    %v104 = vld [vmem:[#allocation5 + $0x28] sm:$0xff]
    %v105 = vld [vmem:[#allocation5 + $0x30] sm:$0xff]
    %v106 = vld [vmem:[#allocation5 + $0x38] sm:$0xff]
    %v107 = vld [vmem:[#allocation5 + $0x40] sm:$0xff]
    %v108 = vld [vmem:[#allocation5 + $0x48] sm:$0xff]
    %v109 = vld [vmem:[#allocation5 + $0x50] sm:$0xff]
    %v110 = vld [vmem:[#allocation5 + $0x58] sm:$0xff]
    %v111 = vld [vmem:[#allocation5 + $0x60] sm:$0xff]
    %v112 = vld [vmem:[#allocation5 + $0x68] sm:$0xff]
    %v113 = vld [vmem:[#allocation5 + $0x70] sm:$0xff]
    %v114 = vld [vmem:[#allocation5 + $0x78] sm:$0xff]
    %v115 = vld [vmem:[#allocation5 + $0x80] sm:$0xff]
    %v116 = vld [vmem:[#allocation5 + $0x88] sm:$0xff]
    %v117 = vld [vmem:[#allocation5 + $0x90] sm:$0xff]
    %v118 = vld [vmem:[#allocation5 + $0x98] sm:$0xff]
    %v119 = vld [vmem:[#allocation5 + $0xa0] sm:$0xff]
    %v120 = vld [vmem:[#allocation5 + $0xa8] sm:$0xff]
    %v121 = vld [vmem:[#allocation5 + $0xb0] sm:$0xff]
    %v122 = vld [vmem:[#allocation5 + $0xb8] sm:$0xff]
    %v123 = vld [vmem:[#allocation5 + $0xc0] sm:$0xff]
    %v124 = vld [vmem:[#allocation5 + $0xc8] sm:$0xff]
    %v125 = vld [vmem:[#allocation5 + $0xd0] sm:$0xff]
    %v126 = vld [vmem:[#allocation5 + $0xd8] sm:$0xff]
    %v127 = vld [vmem:[#allocation5 + $0xe0] sm:$0xff]
    %v128 = vld [vmem:[#allocation5 + $0xe8] sm:$0xff]
    %v129 = vld [vmem:[#allocation5 + $0xf0] sm:$0xff]
    %v130 = vld [vmem:[#allocation5 + $0xf8] sm:$0xff]
    %v131 = vld [vmem:[#allocation5 + $0x100] sm:$0xff]
    %v132 = vld [vmem:[#allocation5 + $0x108] sm:$0xff]
    %v133 = vld [vmem:[#allocation5 + $0x110] sm:$0xff]
    %v134 = vld [vmem:[#allocation5 + $0x118] sm:$0xff]
    %v135 = vld [vmem:[#allocation5 + $0x120] sm:$0xff]
    %v136 = vld [vmem:[#allocation5 + $0x128] sm:$0xff]
    %v137 = vld [vmem:[#allocation5 + $0x130] sm:$0xff]
    %v138 = vld [vmem:[#allocation5 + $0x138] sm:$0xff]
    %v139 = vld [vmem:[#allocation5 + $0x140] sm:$0xff]
    %v140 = vld [vmem:[#allocation5 + $0x148] sm:$0xff]
    %v141 = vld [vmem:[#allocation5 + $0x150] sm:$0xff]
    %v142 = vld [vmem:[#allocation5 + $0x158] sm:$0xff]
    %v143 = vld [vmem:[#allocation5 + $0x160] sm:$0xff]
    %v144 = vld [vmem:[#allocation5 + $0x168] sm:$0xff]
    %v145 = vld [vmem:[#allocation5 + $0x170] sm:$0xff]
    %v146 = vld [vmem:[#allocation5 + $0x178] sm:$0xff]
    %v147 = vld [vmem:[#allocation5 + $0x180] sm:$0xff]
    %v148 = vld [vmem:[#allocation5 + $0x188] sm:$0xff]
    %v149 = vld [vmem:[#allocation5 + $0x190] sm:$0xff]
    %v150 = vld [vmem:[#allocation5 + $0x198] sm:$0xff]
    %v151 = vld [vmem:[#allocation5 + $0x1a0] sm:$0xff]
    %v152 = vld [vmem:[#allocation5 + $0x1a8] sm:$0xff]
    %v153 = vld [vmem:[#allocation5 + $0x1b0] sm:$0xff]
    %v154 = vld [vmem:[#allocation5 + $0x1b8] sm:$0xff]
    %v155 = vld [vmem:[#allocation5 + $0x1c0] sm:$0xff]
    %v156 = vld [vmem:[#allocation5 + $0x1c8] sm:$0xff]
    %v157 = vld [vmem:[#allocation5 + $0x1d0] sm:$0xff]
    %v158 = vld [vmem:[#allocation5 + $0x1d8] sm:$0xff]
    %v159 = vld [vmem:[#allocation5 + $0x1e0] sm:$0xff]
    %v160 = vld [vmem:[#allocation5 + $0x1e8] sm:$0xff]
    %v161 = vld [vmem:[#allocation5 + $0x1f0] sm:$0xff]
    %v162 = vld [vmem:[#allocation5 + $0x1f8] sm:$0xff]
    %v163 = vld [vmem:[#allocation8] sm:$0xf]
    %v165 = vperm.slane %v163, 0
    %v166 = vperm.slane %v163, 1
    %v167 = vperm.slane %v163, 2
    %v168 = vperm.slane %v163, 3
    %173 = vmatpush.msra.mxu0 %v159
    %174 = vmatpush.msra.mxu0 %v155
    %175 = vmatpush.msra.mxu0 %v151
    %176 = vmatpush.msra.mxu0 %v147
    %177 = vmatpush.msra.mxu0 %v143
    %178 = vmatpush.msra.mxu0 %v139
    %179 = vmatpush.msra.mxu0 %v135
    %180 = vmatpush.msra.mxu0 %v131
    %181 = vmatpush.msra.mxu0 %v127
    %182 = vmatpush.msra.mxu0 %v123
    %183 = vmatpush.msra.mxu0 %v119
    %184 = vmatpush.msra.mxu0 %v115
    %185 = vmatpush.msra.mxu0 %v111
    %186 = vmatpush.msra.mxu0 %v107
    %187 = vmatpush.msra.mxu0 %v103
    %188 = vmatpush.msra.mxu0 %v99
    %189 = vmatmul.f32.gmra.mxu0 %v98
    %v190 = vpop.f32.mrf.mxu0
    %v191 = vadd.f32 %v165, %v190
    %192 = vdwg.mxu0
    %193 = vmatpush.msra.mxu0 %v160
    %194 = vmatpush.msra.mxu0 %v156
    %195 = vmatpush.msra.mxu0 %v152
    %196 = vmatpush.msra.mxu0 %v148
    %197 = vmatpush.msra.mxu0 %v144
    %198 = vmatpush.msra.mxu0 %v140
    %199 = vmatpush.msra.mxu0 %v136
    %200 = vmatpush.msra.mxu0 %v132
    %201 = vmatpush.msra.mxu0 %v128
    %202 = vmatpush.msra.mxu0 %v124
    %203 = vmatpush.msra.mxu0 %v120
    %204 = vmatpush.msra.mxu0 %v116
    %205 = vmatpush.msra.mxu0 %v112
    %206 = vmatpush.msra.mxu0 %v108
    %207 = vmatpush.msra.mxu0 %v104
    %208 = vmatpush.msra.mxu0 %v100
    %209 = vmatmul.f32.gmra.mxu0 %v98
    %v210 = vpop.f32.mrf.mxu0
    %v211 = vadd.f32 %v166, %v210
    %212 = vdwg.mxu0
    %213 = vmatpush.msra.mxu0 %v161
    %214 = vmatpush.msra.mxu0 %v157
    %215 = vmatpush.msra.mxu0 %v153
    %216 = vmatpush.msra.mxu0 %v149
    %217 = vmatpush.msra.mxu0 %v145
    %218 = vmatpush.msra.mxu0 %v141
    %219 = vmatpush.msra.mxu0 %v137
    %220 = vmatpush.msra.mxu0 %v133
    %221 = vmatpush.msra.mxu0 %v129
    %222 = vmatpush.msra.mxu0 %v125
    %223 = vmatpush.msra.mxu0 %v121
    %224 = vmatpush.msra.mxu0 %v117
    %225 = vmatpush.msra.mxu0 %v113
    %226 = vmatpush.msra.mxu0 %v109
    %227 = vmatpush.msra.mxu0 %v105
    %228 = vmatpush.msra.mxu0 %v101
    %229 = vmatmul.f32.gmra.mxu0 %v98
    %v230 = vpop.f32.mrf.mxu0
    %v231 = vadd.f32 %v167, %v230
    %232 = vdwg.mxu0
    %233 = vmatpush.msra.mxu0 %v162
    %234 = vmatpush.msra.mxu0 %v158
    %235 = vmatpush.msra.mxu0 %v154
    %236 = vmatpush.msra.mxu0 %v150
    %237 = vmatpush.msra.mxu0 %v146
    %238 = vmatpush.msra.mxu0 %v142
    %239 = vmatpush.msra.mxu0 %v138
    %240 = vmatpush.msra.mxu0 %v134
    %241 = vmatpush.msra.mxu0 %v130
    %242 = vmatpush.msra.mxu0 %v126
    %243 = vmatpush.msra.mxu0 %v122
    %244 = vmatpush.msra.mxu0 %v118
    %245 = vmatpush.msra.mxu0 %v114
    %246 = vmatpush.msra.mxu0 %v110
    %247 = vmatpush.msra.mxu0 %v106
    %248 = vmatpush.msra.mxu0 %v102
    %249 = vmatmul.f32.gmra.mxu0 %v98
    %v250 = vpop.f32.mrf.mxu0
    %v251 = vadd.f32 %v168, %v250
    %252 = vdwg.mxu0
    %v253 = vld [vmem:[#allocation7] sm:$0xff]
    %v254 = vld [vmem:[#allocation7 + $0x8] sm:$0xff]
    %v255 = vld [vmem:[#allocation7 + $0x10] sm:$0xff]
    %v256 = vld [vmem:[#allocation7 + $0x18] sm:$0xff]
    %v257 = vld [vmem:[#allocation7 + $0x20] sm:$0xff]
    %v258 = vld [vmem:[#allocation7 + $0x28] sm:$0xff]
    %v259 = vld [vmem:[#allocation7 + $0x30] sm:$0xff]
    %v260 = vld [vmem:[#allocation7 + $0x38] sm:$0xff]
    %v261 = vld [vmem:[#allocation7 + $0x40] sm:$0xff]
    %v262 = vld [vmem:[#allocation7 + $0x48] sm:$0xff]
    %v263 = vld [vmem:[#allocation7 + $0x50] sm:$0xff]
    %v264 = vld [vmem:[#allocation7 + $0x58] sm:$0xff]
    %v265 = vld [vmem:[#allocation7 + $0x60] sm:$0xff]
    %v266 = vld [vmem:[#allocation7 + $0x68] sm:$0xff]
    %v267 = vld [vmem:[#allocation7 + $0x70] sm:$0xff]
    %v268 = vld [vmem:[#allocation7 + $0x78] sm:$0xff]
    %v269 = vld [vmem:[#allocation7 + $0x80] sm:$0xff]
    %v270 = vld [vmem:[#allocation7 + $0x88] sm:$0xff]
    %v271 = vld [vmem:[#allocation7 + $0x90] sm:$0xff]
    %v272 = vld [vmem:[#allocation7 + $0x98] sm:$0xff]
    %v273 = vld [vmem:[#allocation7 + $0xa0] sm:$0xff]
    %v274 = vld [vmem:[#allocation7 + $0xa8] sm:$0xff]
    %v275 = vld [vmem:[#allocation7 + $0xb0] sm:$0xff]
    %v276 = vld [vmem:[#allocation7 + $0xb8] sm:$0xff]
    %v277 = vld [vmem:[#allocation7 + $0xc0] sm:$0xff]
    %v278 = vld [vmem:[#allocation7 + $0xc8] sm:$0xff]
    %v279 = vld [vmem:[#allocation7 + $0xd0] sm:$0xff]
    %v280 = vld [vmem:[#allocation7 + $0xd8] sm:$0xff]
    %v281 = vld [vmem:[#allocation7 + $0xe0] sm:$0xff]
    %v282 = vld [vmem:[#allocation7 + $0xe8] sm:$0xff]
    %v283 = vld [vmem:[#allocation7 + $0xf0] sm:$0xff]
    %v284 = vld [vmem:[#allocation7 + $0xf8] sm:$0xff]
    %v285 = vld [vmem:[#allocation7 + $0x100] sm:$0xff]
    %v286 = vld [vmem:[#allocation7 + $0x108] sm:$0xff]
    %v287 = vld [vmem:[#allocation7 + $0x110] sm:$0xff]
    %v288 = vld [vmem:[#allocation7 + $0x118] sm:$0xff]
    %v289 = vld [vmem:[#allocation7 + $0x120] sm:$0xff]
    %v290 = vld [vmem:[#allocation7 + $0x128] sm:$0xff]
    %v291 = vld [vmem:[#allocation7 + $0x130] sm:$0xff]
    %v292 = vld [vmem:[#allocation7 + $0x138] sm:$0xff]
    %v293 = vld [vmem:[#allocation7 + $0x140] sm:$0xff]
    %v294 = vld [vmem:[#allocation7 + $0x148] sm:$0xff]
    %v295 = vld [vmem:[#allocation7 + $0x150] sm:$0xff]
    %v296 = vld [vmem:[#allocation7 + $0x158] sm:$0xff]
    %v297 = vld [vmem:[#allocation7 + $0x160] sm:$0xff]
    %v298 = vld [vmem:[#allocation7 + $0x168] sm:$0xff]
    %v299 = vld [vmem:[#allocation7 + $0x170] sm:$0xff]
    %v300 = vld [vmem:[#allocation7 + $0x178] sm:$0xff]
    %v301 = vld [vmem:[#allocation7 + $0x180] sm:$0xff]
    %v302 = vld [vmem:[#allocation7 + $0x188] sm:$0xff]
    %v303 = vld [vmem:[#allocation7 + $0x190] sm:$0xff]
    %v304 = vld [vmem:[#allocation7 + $0x198] sm:$0xff]
    %v305 = vld [vmem:[#allocation7 + $0x1a0] sm:$0xff]
    %v306 = vld [vmem:[#allocation7 + $0x1a8] sm:$0xff]
    %v307 = vld [vmem:[#allocation7 + $0x1b0] sm:$0xff]
    %v308 = vld [vmem:[#allocation7 + $0x1b8] sm:$0xff]
    %v309 = vld [vmem:[#allocation7 + $0x1c0] sm:$0xff]
    %v310 = vld [vmem:[#allocation7 + $0x1c8] sm:$0xff]
    %v311 = vld [vmem:[#allocation7 + $0x1d0] sm:$0xff]
    %v312 = vld [vmem:[#allocation7 + $0x1d8] sm:$0xff]
    %v313 = vld [vmem:[#allocation7 + $0x1e0] sm:$0xff]
    %v314 = vld [vmem:[#allocation7 + $0x1e8] sm:$0xff]
    %v315 = vld [vmem:[#allocation7 + $0x1f0] sm:$0xff]
    %v316 = vld [vmem:[#allocation7 + $0x1f8] sm:$0xff]
    %317 = vmatpush.msra.mxu0 %v313
    %318 = vmatpush.msra.mxu0 %v309
    %319 = vmatpush.msra.mxu0 %v305
    %320 = vmatpush.msra.mxu0 %v301
    %321 = vmatpush.msra.mxu0 %v297
    %322 = vmatpush.msra.mxu0 %v293
    %323 = vmatpush.msra.mxu0 %v289
    %324 = vmatpush.msra.mxu0 %v285
    %325 = vmatpush.msra.mxu0 %v281
    %326 = vmatpush.msra.mxu0 %v277
    %327 = vmatpush.msra.mxu0 %v273
    %328 = vmatpush.msra.mxu0 %v269
    %329 = vmatpush.msra.mxu0 %v265
    %330 = vmatpush.msra.mxu0 %v261
    %331 = vmatpush.msra.mxu0 %v257
    %332 = vmatpush.msra.mxu0 %v253
    %333 = vmatmul.f32.gmra.mxu0 0.0
    %v334 = vpop.f32.mrf.mxu0
    %v335 = vadd.f32 0.0, %v334
    %336 = vdwg.mxu0
    %337 = vmatpush.msra.mxu0 %v314
    %338 = vmatpush.msra.mxu0 %v310
    %339 = vmatpush.msra.mxu0 %v306
    %340 = vmatpush.msra.mxu0 %v302
    %341 = vmatpush.msra.mxu0 %v298
    %342 = vmatpush.msra.mxu0 %v294
    %343 = vmatpush.msra.mxu0 %v290
    %344 = vmatpush.msra.mxu0 %v286
    %345 = vmatpush.msra.mxu0 %v282
    %346 = vmatpush.msra.mxu0 %v278
    %347 = vmatpush.msra.mxu0 %v274
    %348 = vmatpush.msra.mxu0 %v270
    %349 = vmatpush.msra.mxu0 %v266
    %350 = vmatpush.msra.mxu0 %v262
    %351 = vmatpush.msra.mxu0 %v258
    %352 = vmatpush.msra.mxu0 %v254
    %353 = vmatmul.f32.gmra.mxu0 0.0
    %v354 = vpop.f32.mrf.mxu0
    %v355 = vadd.f32 0.0, %v354
    %356 = vdwg.mxu0
    %357 = vmatpush.msra.mxu0 %v315
    %358 = vmatpush.msra.mxu0 %v311
    %359 = vmatpush.msra.mxu0 %v307
    %360 = vmatpush.msra.mxu0 %v303
    %361 = vmatpush.msra.mxu0 %v299
    %362 = vmatpush.msra.mxu0 %v295
    %363 = vmatpush.msra.mxu0 %v291
    %364 = vmatpush.msra.mxu0 %v287
    %365 = vmatpush.msra.mxu0 %v283
    %366 = vmatpush.msra.mxu0 %v279
    %367 = vmatpush.msra.mxu0 %v275
    %368 = vmatpush.msra.mxu0 %v271
    %369 = vmatpush.msra.mxu0 %v267
    %370 = vmatpush.msra.mxu0 %v263
    %371 = vmatpush.msra.mxu0 %v259
    %372 = vmatpush.msra.mxu0 %v255
    %373 = vmatmul.f32.gmra.mxu0 0.0
    %v374 = vpop.f32.mrf.mxu0
    %v375 = vadd.f32 0.0, %v374
    %376 = vdwg.mxu0
    %377 = vmatpush.msra.mxu0 %v316
    %378 = vmatpush.msra.mxu0 %v312
    %379 = vmatpush.msra.mxu0 %v308
    %380 = vmatpush.msra.mxu0 %v304
    %381 = vmatpush.msra.mxu0 %v300
    %382 = vmatpush.msra.mxu0 %v296
    %383 = vmatpush.msra.mxu0 %v292
    %384 = vmatpush.msra.mxu0 %v288
    %385 = vmatpush.msra.mxu0 %v284
    %386 = vmatpush.msra.mxu0 %v280
    %387 = vmatpush.msra.mxu0 %v276
    %388 = vmatpush.msra.mxu0 %v272
    %389 = vmatpush.msra.mxu0 %v268
    %390 = vmatpush.msra.mxu0 %v264
    %391 = vmatpush.msra.mxu0 %v260
    %392 = vmatpush.msra.mxu0 %v256
    %393 = vmatmul.f32.gmra.mxu0 0.0
    %v394 = vpop.f32.mrf.mxu0
    %v395 = vadd.f32 0.0, %v394
    %396 = vdwg.mxu0
    %v397 = vadd.f32 %v191, %v335
    %v398 = vadd.f32 %v211, %v355
    %v399 = vadd.f32 %v231, %v375
    %v400 = vadd.f32 %v251, %v395
    %v401 = vxor.u32 %v397, 2147483648
    %v402 = vxor.u32 %v398, 2147483648
    %v403 = vxor.u32 %v399, 2147483648
    %v404 = vmul.f32 %v401, 1.442695
    %v405 = vpow.pop %v404
    %v406 = vmul.f32 %v402, 1.442695
    %v407 = vpow.pop %v406
    %v408 = vmul.f32 %v403, 1.442695
    %v409 = vpow.pop %v408
    %v410 = vadd.f32 %v405, 1.0
    %v411 = vadd.f32 %v407, 1.0
    %v412 = vadd.f32 %v409, 1.0
    %v413 = vrcp.pop %v410
    %v414 = vmul.f32 %v410, %v413
    %v415 = vsub.f32 1.0, %v414
    %v416 = vmul.f32 %v413, %v415
    %v417 = vadd.f32 %v413, %v416
    %vm418 = vweird.f32 %v410
    %vm419 = vweird.f32 %v413
    %vm420 = vmor %vm418, %vm419
    %v421 = vsel %vm420, %v413, %v417
    %v422 = vand.u32 2147483647, %v410
    %vm423 = vcmp.eq.f32.partialorder %v422, 8.507059e+37
    %v424 = vand.u32 %v410, 2147483648
    %v425 = vor.u32 1.1754944e-38, %v424
    %v426 = vsel %vm423, %v425, %v421
    %v427 = vmul.f32 1.0, %v426
    %v428 = vrcp.pop %v411
    %v429 = vmul.f32 %v411, %v428
    %v430 = vsub.f32 1.0, %v429
    %v431 = vmul.f32 %v428, %v430
    %v432 = vadd.f32 %v428, %v431
    %vm433 = vweird.f32 %v411
    %vm434 = vweird.f32 %v428
    %vm435 = vmor %vm433, %vm434
    %v436 = vsel %vm435, %v428, %v432
    %v437 = vand.u32 2147483647, %v411
    %vm438 = vcmp.eq.f32.partialorder %v437, 8.507059e+37
    %v439 = vand.u32 %v411, 2147483648
    %v440 = vor.u32 1.1754944e-38, %v439
    %v441 = vsel %vm438, %v440, %v436
    %v442 = vmul.f32 1.0, %v441
    %v443 = vrcp.pop %v412
    %v444 = vmul.f32 %v412, %v443
    %v445 = vsub.f32 1.0, %v444
    %v446 = vmul.f32 %v443, %v445
    %v447 = vadd.f32 %v443, %v446
    %vm448 = vweird.f32 %v412
    %vm449 = vweird.f32 %v443
    %vm450 = vmor %vm448, %vm449
    %v451 = vsel %vm450, %v443, %v447
    %v452 = vand.u32 2147483647, %v412
    %vm453 = vcmp.eq.f32.partialorder %v452, 8.507059e+37
    %v454 = vand.u32 %v412, 2147483648
    %v455 = vor.u32 1.1754944e-38, %v454
    %v456 = vsel %vm453, %v455, %v451
    %v457 = vmul.f32 1.0, %v456
    %v458 = vtanh.pop %v400
    %v459 = vmul.f32 %v442, 0.0
    %v460 = vmul.f32 %v427, %v458
    %v461 = vadd.f32 %v459, %v460
    %v462 = vtanh.pop %v461
    %v463 = vmul.f32 %v457, %v462
    %464 = vmatpush.msra.mxu0 %v313
    %465 = vmatpush.msra.mxu0 %v309
    %466 = vmatpush.msra.mxu0 %v305
    %467 = vmatpush.msra.mxu0 %v301
    %468 = vmatpush.msra.mxu0 %v297
    %469 = vmatpush.msra.mxu0 %v293
    %470 = vmatpush.msra.mxu0 %v289
    %471 = vmatpush.msra.mxu0 %v285
    %472 = vmatpush.msra.mxu0 %v281
    %473 = vmatpush.msra.mxu0 %v277
    %474 = vmatpush.msra.mxu0 %v273
    %475 = vmatpush.msra.mxu0 %v269
    %476 = vmatpush.msra.mxu0 %v265
    %477 = vmatpush.msra.mxu0 %v261
    %478 = vmatpush.msra.mxu0 %v257
    %479 = vmatpush.msra.mxu0 %v253
    %480 = vmatmul.f32.gmra.mxu0 %v463
    %v481 = vpop.f32.mrf.mxu0
    %v482 = vadd.f32 0.0, %v481
    %483 = vdwg.mxu0
    %484 = vmatpush.msra.mxu0 %v314
    %485 = vmatpush.msra.mxu0 %v310
    %486 = vmatpush.msra.mxu0 %v306
    %487 = vmatpush.msra.mxu0 %v302
    %488 = vmatpush.msra.mxu0 %v298
    %489 = vmatpush.msra.mxu0 %v294
    %490 = vmatpush.msra.mxu0 %v290
    %491 = vmatpush.msra.mxu0 %v286
    %492 = vmatpush.msra.mxu0 %v282
    %493 = vmatpush.msra.mxu0 %v278
    %494 = vmatpush.msra.mxu0 %v274
    %495 = vmatpush.msra.mxu0 %v270
    %496 = vmatpush.msra.mxu0 %v266
    %497 = vmatpush.msra.mxu0 %v262
    %498 = vmatpush.msra.mxu0 %v258
    %499 = vmatpush.msra.mxu0 %v254
    %500 = vmatmul.f32.gmra.mxu0 %v463
    %v501 = vpop.f32.mrf.mxu0
    %v502 = vadd.f32 0.0, %v501
    %503 = vdwg.mxu0
    %504 = vmatpush.msra.mxu0 %v315
    %505 = vmatpush.msra.mxu0 %v311
    %506 = vmatpush.msra.mxu0 %v307
    %507 = vmatpush.msra.mxu0 %v303
    %508 = vmatpush.msra.mxu0 %v299
    %509 = vmatpush.msra.mxu0 %v295
    %510 = vmatpush.msra.mxu0 %v291
    %511 = vmatpush.msra.mxu0 %v287
    %512 = vmatpush.msra.mxu0 %v283
    %513 = vmatpush.msra.mxu0 %v279
    %514 = vmatpush.msra.mxu0 %v275
    %515 = vmatpush.msra.mxu0 %v271
    %516 = vmatpush.msra.mxu0 %v267
    %517 = vmatpush.msra.mxu0 %v263
    %518 = vmatpush.msra.mxu0 %v259
    %519 = vmatpush.msra.mxu0 %v255
    %520 = vmatmul.f32.gmra.mxu0 %v463
    %v521 = vpop.f32.mrf.mxu0
    %v522 = vadd.f32 0.0, %v521
    %523 = vdwg.mxu0
    %524 = vmatpush.msra.mxu0 %v316
    %525 = vmatpush.msra.mxu0 %v312
    %526 = vmatpush.msra.mxu0 %v308
    %527 = vmatpush.msra.mxu0 %v304
    %528 = vmatpush.msra.mxu0 %v300
    %529 = vmatpush.msra.mxu0 %v296
    %530 = vmatpush.msra.mxu0 %v292
    %531 = vmatpush.msra.mxu0 %v288
    %532 = vmatpush.msra.mxu0 %v284
    %533 = vmatpush.msra.mxu0 %v280
    %534 = vmatpush.msra.mxu0 %v276
    %535 = vmatpush.msra.mxu0 %v272
    %536 = vmatpush.msra.mxu0 %v268
    %537 = vmatpush.msra.mxu0 %v264
    %538 = vmatpush.msra.mxu0 %v260
    %539 = vmatpush.msra.mxu0 %v256
    %540 = vmatmul.f32.gmra.mxu0 %v463
    %v541 = vpop.f32.mrf.mxu0
    %v542 = vadd.f32 0.0, %v541
    %543 = vdwg.mxu0
    %v548 = vrot.slane %v482, 7
    %v549 = vrot.slane %v502, 7
    %v550 = vrot.slane %v522, 7
    %v551 = vrot.slane %v542, 7
    %v556 = vadd.f32 %v191, %v548
    %v557 = vadd.f32 %v211, %v549
    %v558 = vadd.f32 %v231, %v550
    %v559 = vadd.f32 %v251, %v551
    %v560 = vxor.u32 %v556, 2147483648
    %v561 = vxor.u32 %v557, 2147483648
    %v562 = vxor.u32 %v558, 2147483648
    %v563 = vmul.f32 %v560, 1.442695
    %v564 = vpow.pop %v563
    %v565 = vmul.f32 %v561, 1.442695
    %v566 = vpow.pop %v565
    %v567 = vmul.f32 %v562, 1.442695
    %v568 = vpow.pop %v567
    %v569 = vadd.f32 %v564, 1.0
    %v570 = vadd.f32 %v566, 1.0
    %v571 = vadd.f32 %v568, 1.0
    %v572 = vrcp.pop %v569
    %v573 = vmul.f32 %v569, %v572
    %v574 = vsub.f32 1.0, %v573
    %v575 = vmul.f32 %v572, %v574
    %v576 = vadd.f32 %v572, %v575
    %vm577 = vweird.f32 %v569
    %vm578 = vweird.f32 %v572
    %vm579 = vmor %vm577, %vm578
    %v580 = vsel %vm579, %v572, %v576
    %v581 = vand.u32 2147483647, %v569
    %vm582 = vcmp.eq.f32.partialorder %v581, 8.507059e+37
    %v583 = vand.u32 %v569, 2147483648
    %v584 = vor.u32 1.1754944e-38, %v583
    %v585 = vsel %vm582, %v584, %v580
    %v586 = vmul.f32 1.0, %v585
    %v587 = vrcp.pop %v570
    %v588 = vmul.f32 %v570, %v587
    %v589 = vsub.f32 1.0, %v588
    %v590 = vmul.f32 %v587, %v589
    %v591 = vadd.f32 %v587, %v590
    %vm592 = vweird.f32 %v570
    %vm593 = vweird.f32 %v587
    %vm594 = vmor %vm592, %vm593
    %v595 = vsel %vm594, %v587, %v591
    %v596 = vand.u32 2147483647, %v570
    %vm597 = vcmp.eq.f32.partialorder %v596, 8.507059e+37
    %v598 = vand.u32 %v570, 2147483648
    %v599 = vor.u32 1.1754944e-38, %v598
    %v600 = vsel %vm597, %v599, %v595
    %v601 = vmul.f32 1.0, %v600
    %v602 = vrcp.pop %v571
    %v603 = vmul.f32 %v571, %v602
    %v604 = vsub.f32 1.0, %v603
    %v605 = vmul.f32 %v602, %v604
    %v606 = vadd.f32 %v602, %v605
    %vm607 = vweird.f32 %v571
    %vm608 = vweird.f32 %v602
    %vm609 = vmor %vm607, %vm608
    %v610 = vsel %vm609, %v602, %v606
    %v611 = vand.u32 2147483647, %v571
    %vm612 = vcmp.eq.f32.partialorder %v611, 8.507059e+37
    %v613 = vand.u32 %v571, 2147483648
    %v614 = vor.u32 1.1754944e-38, %v613
    %v615 = vsel %vm612, %v614, %v610
    %v616 = vmul.f32 1.0, %v615
    %v617 = vtanh.pop %v559
    %v619 = vrot.slane %v461, 7
    %v621 = vmul.f32 %v601, %v619
    %v622 = vmul.f32 %v586, %v617
    %v623 = vadd.f32 %v621, %v622
    %v624 = vtanh.pop %v623
    %v625 = vmul.f32 %v616, %v624
    %v627 = vrot.slane %v625, 1
    %629 = vmatpush.msra.mxu0 %v313
    %630 = vmatpush.msra.mxu0 %v309
    %631 = vmatpush.msra.mxu0 %v305
    %632 = vmatpush.msra.mxu0 %v301
    %633 = vmatpush.msra.mxu0 %v297
    %634 = vmatpush.msra.mxu0 %v293
    %635 = vmatpush.msra.mxu0 %v289
    %636 = vmatpush.msra.mxu0 %v285
    %637 = vmatpush.msra.mxu0 %v281
    %638 = vmatpush.msra.mxu0 %v277
    %639 = vmatpush.msra.mxu0 %v273
    %640 = vmatpush.msra.mxu0 %v269
    %641 = vmatpush.msra.mxu0 %v265
    %642 = vmatpush.msra.mxu0 %v261
    %643 = vmatpush.msra.mxu0 %v257
    %644 = vmatpush.msra.mxu0 %v253
    %645 = vmatmul.f32.gmra.mxu0 %v627
    %v646 = vpop.f32.mrf.mxu0
    %v647 = vadd.f32 0.0, %v646
    %648 = vdwg.mxu0
    %649 = vmatpush.msra.mxu0 %v314
    %650 = vmatpush.msra.mxu0 %v310
    %651 = vmatpush.msra.mxu0 %v306
    %652 = vmatpush.msra.mxu0 %v302
    %653 = vmatpush.msra.mxu0 %v298
    %654 = vmatpush.msra.mxu0 %v294
    %655 = vmatpush.msra.mxu0 %v290
    %656 = vmatpush.msra.mxu0 %v286
    %657 = vmatpush.msra.mxu0 %v282
    %658 = vmatpush.msra.mxu0 %v278
    %659 = vmatpush.msra.mxu0 %v274
    %660 = vmatpush.msra.mxu0 %v270
    %661 = vmatpush.msra.mxu0 %v266
    %662 = vmatpush.msra.mxu0 %v262
    %663 = vmatpush.msra.mxu0 %v258
    %664 = vmatpush.msra.mxu0 %v254
    %665 = vmatmul.f32.gmra.mxu0 %v627
    %v666 = vpop.f32.mrf.mxu0
    %v667 = vadd.f32 0.0, %v666
    %668 = vdwg.mxu0
    %669 = vmatpush.msra.mxu0 %v315
    %670 = vmatpush.msra.mxu0 %v311
    %671 = vmatpush.msra.mxu0 %v307
    %672 = vmatpush.msra.mxu0 %v303
    %673 = vmatpush.msra.mxu0 %v299
    %674 = vmatpush.msra.mxu0 %v295
    %675 = vmatpush.msra.mxu0 %v291
    %676 = vmatpush.msra.mxu0 %v287
    %677 = vmatpush.msra.mxu0 %v283
    %678 = vmatpush.msra.mxu0 %v279
    %679 = vmatpush.msra.mxu0 %v275
    %680 = vmatpush.msra.mxu0 %v271
    %681 = vmatpush.msra.mxu0 %v267
    %682 = vmatpush.msra.mxu0 %v263
    %683 = vmatpush.msra.mxu0 %v259
    %684 = vmatpush.msra.mxu0 %v255
    %685 = vmatmul.f32.gmra.mxu0 %v627
    %v686 = vpop.f32.mrf.mxu0
    %v687 = vadd.f32 0.0, %v686
    %688 = vdwg.mxu0
    %689 = vmatpush.msra.mxu0 %v316
    %690 = vmatpush.msra.mxu0 %v312
    %691 = vmatpush.msra.mxu0 %v308
    %692 = vmatpush.msra.mxu0 %v304
    %693 = vmatpush.msra.mxu0 %v300
    %694 = vmatpush.msra.mxu0 %v296
    %695 = vmatpush.msra.mxu0 %v292
    %696 = vmatpush.msra.mxu0 %v288
    %697 = vmatpush.msra.mxu0 %v284
    %698 = vmatpush.msra.mxu0 %v280
    %699 = vmatpush.msra.mxu0 %v276
    %700 = vmatpush.msra.mxu0 %v272
    %701 = vmatpush.msra.mxu0 %v268
    %702 = vmatpush.msra.mxu0 %v264
    %703 = vmatpush.msra.mxu0 %v260
    %704 = vmatpush.msra.mxu0 %v256
    %705 = vmatmul.f32.gmra.mxu0 %v627
    %v706 = vpop.f32.mrf.mxu0
    %v707 = vadd.f32 0.0, %v706
    %708 = vdwg.mxu0
    %v713 = vrot.slane %v647, 6
    %v714 = vrot.slane %v667, 6
    %v715 = vrot.slane %v687, 6
    %v716 = vrot.slane %v707, 6
    %v721 = vadd.f32 %v191, %v713
    %v722 = vadd.f32 %v211, %v714
    %v723 = vadd.f32 %v231, %v715
    %v724 = vadd.f32 %v251, %v716
    %v725 = vxor.u32 %v721, 2147483648
    %v726 = vxor.u32 %v722, 2147483648
    %v727 = vxor.u32 %v723, 2147483648
    %v728 = vmul.f32 %v725, 1.442695
    %v729 = vpow.pop %v728
    %v730 = vmul.f32 %v726, 1.442695
    %v731 = vpow.pop %v730
    %v732 = vmul.f32 %v727, 1.442695
    %v733 = vpow.pop %v732
    %v734 = vadd.f32 %v729, 1.0
    %v735 = vadd.f32 %v731, 1.0
    %v736 = vadd.f32 %v733, 1.0
    %v737 = vrcp.pop %v734
    %v738 = vmul.f32 %v734, %v737
    %v739 = vsub.f32 1.0, %v738
    %v740 = vmul.f32 %v737, %v739
    %v741 = vadd.f32 %v737, %v740
    %vm742 = vweird.f32 %v734
    %vm743 = vweird.f32 %v737
    %vm744 = vmor %vm742, %vm743
    %v745 = vsel %vm744, %v737, %v741
    %v746 = vand.u32 2147483647, %v734
    %vm747 = vcmp.eq.f32.partialorder %v746, 8.507059e+37
    %v748 = vand.u32 %v734, 2147483648
    %v749 = vor.u32 1.1754944e-38, %v748
    %v750 = vsel %vm747, %v749, %v745
    %v751 = vmul.f32 1.0, %v750
    %v752 = vrcp.pop %v735
    %v753 = vmul.f32 %v735, %v752
    %v754 = vsub.f32 1.0, %v753
    %v755 = vmul.f32 %v752, %v754
    %v756 = vadd.f32 %v752, %v755
    %vm757 = vweird.f32 %v735
    %vm758 = vweird.f32 %v752
    %vm759 = vmor %vm757, %vm758
    %v760 = vsel %vm759, %v752, %v756
    %v761 = vand.u32 2147483647, %v735
    %vm762 = vcmp.eq.f32.partialorder %v761, 8.507059e+37
    %v763 = vand.u32 %v735, 2147483648
    %v764 = vor.u32 1.1754944e-38, %v763
    %v765 = vsel %vm762, %v764, %v760
    %v766 = vmul.f32 1.0, %v765
    %v767 = vrcp.pop %v736
    %v768 = vmul.f32 %v736, %v767
    %v769 = vsub.f32 1.0, %v768
    %v770 = vmul.f32 %v767, %v769
    %v771 = vadd.f32 %v767, %v770
    %vm772 = vweird.f32 %v736
    %vm773 = vweird.f32 %v767
    %vm774 = vmor %vm772, %vm773
    %v775 = vsel %vm774, %v767, %v771
    %v776 = vand.u32 2147483647, %v736
    %vm777 = vcmp.eq.f32.partialorder %v776, 8.507059e+37
    %v778 = vand.u32 %v736, 2147483648
    %v779 = vor.u32 1.1754944e-38, %v778
    %v780 = vsel %vm777, %v779, %v775
    %v781 = vmul.f32 1.0, %v780
    %v782 = vtanh.pop %v724
    %v784 = vrot.slane %v623, 7
    %v786 = vmul.f32 %v766, %v784
    %v787 = vmul.f32 %v751, %v782
    %v788 = vadd.f32 %v786, %v787
    %v789 = vtanh.pop %v788
    %v790 = vmul.f32 %v781, %v789
    %v792 = vrot.slane %v790, 2
    %794 = vmatpush.msra.mxu0 %v313
    %795 = vmatpush.msra.mxu0 %v309
    %796 = vmatpush.msra.mxu0 %v305
    %797 = vmatpush.msra.mxu0 %v301
    %798 = vmatpush.msra.mxu0 %v297
    %799 = vmatpush.msra.mxu0 %v293
    %800 = vmatpush.msra.mxu0 %v289
    %801 = vmatpush.msra.mxu0 %v285
    %802 = vmatpush.msra.mxu0 %v281
    %803 = vmatpush.msra.mxu0 %v277
    %804 = vmatpush.msra.mxu0 %v273
    %805 = vmatpush.msra.mxu0 %v269
    %806 = vmatpush.msra.mxu0 %v265
    %807 = vmatpush.msra.mxu0 %v261
    %808 = vmatpush.msra.mxu0 %v257
    %809 = vmatpush.msra.mxu0 %v253
    %810 = vmatmul.f32.gmra.mxu0 %v792
    %v811 = vpop.f32.mrf.mxu0
    %v812 = vadd.f32 0.0, %v811
    %813 = vdwg.mxu0
    %814 = vmatpush.msra.mxu0 %v314
    %815 = vmatpush.msra.mxu0 %v310
    %816 = vmatpush.msra.mxu0 %v306
    %817 = vmatpush.msra.mxu0 %v302
    %818 = vmatpush.msra.mxu0 %v298
    %819 = vmatpush.msra.mxu0 %v294
    %820 = vmatpush.msra.mxu0 %v290
    %821 = vmatpush.msra.mxu0 %v286
    %822 = vmatpush.msra.mxu0 %v282
    %823 = vmatpush.msra.mxu0 %v278
    %824 = vmatpush.msra.mxu0 %v274
    %825 = vmatpush.msra.mxu0 %v270
    %826 = vmatpush.msra.mxu0 %v266
    %827 = vmatpush.msra.mxu0 %v262
    %828 = vmatpush.msra.mxu0 %v258
    %829 = vmatpush.msra.mxu0 %v254
    %830 = vmatmul.f32.gmra.mxu0 %v792
    %v831 = vpop.f32.mrf.mxu0
    %v832 = vadd.f32 0.0, %v831
    %833 = vdwg.mxu0
    %834 = vmatpush.msra.mxu0 %v315
    %835 = vmatpush.msra.mxu0 %v311
    %836 = vmatpush.msra.mxu0 %v307
    %837 = vmatpush.msra.mxu0 %v303
    %838 = vmatpush.msra.mxu0 %v299
    %839 = vmatpush.msra.mxu0 %v295
    %840 = vmatpush.msra.mxu0 %v291
    %841 = vmatpush.msra.mxu0 %v287
    %842 = vmatpush.msra.mxu0 %v283
    %843 = vmatpush.msra.mxu0 %v279
    %844 = vmatpush.msra.mxu0 %v275
    %845 = vmatpush.msra.mxu0 %v271
    %846 = vmatpush.msra.mxu0 %v267
    %847 = vmatpush.msra.mxu0 %v263
    %848 = vmatpush.msra.mxu0 %v259
    %849 = vmatpush.msra.mxu0 %v255
    %850 = vmatmul.f32.gmra.mxu0 %v792
    %v851 = vpop.f32.mrf.mxu0
    %v852 = vadd.f32 0.0, %v851
    %853 = vdwg.mxu0
    %854 = vmatpush.msra.mxu0 %v316
    %855 = vmatpush.msra.mxu0 %v312
    %856 = vmatpush.msra.mxu0 %v308
    %857 = vmatpush.msra.mxu0 %v304
    %858 = vmatpush.msra.mxu0 %v300
    %859 = vmatpush.msra.mxu0 %v296
    %860 = vmatpush.msra.mxu0 %v292
    %861 = vmatpush.msra.mxu0 %v288
    %862 = vmatpush.msra.mxu0 %v284
    %863 = vmatpush.msra.mxu0 %v280
    %864 = vmatpush.msra.mxu0 %v276
    %865 = vmatpush.msra.mxu0 %v272
    %866 = vmatpush.msra.mxu0 %v268
    %867 = vmatpush.msra.mxu0 %v264
    %868 = vmatpush.msra.mxu0 %v260
    %869 = vmatpush.msra.mxu0 %v256
    %870 = vmatmul.f32.gmra.mxu0 %v792
    %v871 = vpop.f32.mrf.mxu0
    %v872 = vadd.f32 0.0, %v871
    %873 = vdwg.mxu0
    %v878 = vrot.slane %v812, 5
    %v879 = vrot.slane %v832, 5
    %v880 = vrot.slane %v852, 5
    %v881 = vrot.slane %v872, 5
    %v886 = vadd.f32 %v191, %v878
    %v887 = vadd.f32 %v211, %v879
    %v888 = vadd.f32 %v231, %v880
    %v889 = vadd.f32 %v251, %v881
    %v890 = vxor.u32 %v886, 2147483648
    %v891 = vxor.u32 %v887, 2147483648
    %v892 = vxor.u32 %v888, 2147483648
    %v893 = vmul.f32 %v890, 1.442695
    %v894 = vpow.pop %v893
    %v895 = vmul.f32 %v891, 1.442695
    %v896 = vpow.pop %v895
    %v897 = vmul.f32 %v892, 1.442695
    %v898 = vpow.pop %v897
    %v899 = vadd.f32 %v894, 1.0
    %v900 = vadd.f32 %v896, 1.0
    %v901 = vadd.f32 %v898, 1.0
    %v902 = vrcp.pop %v899
    %v903 = vmul.f32 %v899, %v902
    %v904 = vsub.f32 1.0, %v903
    %v905 = vmul.f32 %v902, %v904
    %v906 = vadd.f32 %v902, %v905
    %vm907 = vweird.f32 %v899
    %vm908 = vweird.f32 %v902
    %vm909 = vmor %vm907, %vm908
    %v910 = vsel %vm909, %v902, %v906
    %v911 = vand.u32 2147483647, %v899
    %vm912 = vcmp.eq.f32.partialorder %v911, 8.507059e+37
    %v913 = vand.u32 %v899, 2147483648
    %v914 = vor.u32 1.1754944e-38, %v913
    %v915 = vsel %vm912, %v914, %v910
    %v916 = vmul.f32 1.0, %v915
    %v917 = vrcp.pop %v900
    %v918 = vmul.f32 %v900, %v917
    %v919 = vsub.f32 1.0, %v918
    %v920 = vmul.f32 %v917, %v919
    %v921 = vadd.f32 %v917, %v920
    %vm922 = vweird.f32 %v900
    %vm923 = vweird.f32 %v917
    %vm924 = vmor %vm922, %vm923
    %v925 = vsel %vm924, %v917, %v921
    %v926 = vand.u32 2147483647, %v900
    %vm927 = vcmp.eq.f32.partialorder %v926, 8.507059e+37
    %v928 = vand.u32 %v900, 2147483648
    %v929 = vor.u32 1.1754944e-38, %v928
    %v930 = vsel %vm927, %v929, %v925
    %v931 = vmul.f32 1.0, %v930
    %v932 = vrcp.pop %v901
    %v933 = vmul.f32 %v901, %v932
    %v934 = vsub.f32 1.0, %v933
    %v935 = vmul.f32 %v932, %v934
    %v936 = vadd.f32 %v932, %v935
    %vm937 = vweird.f32 %v901
    %vm938 = vweird.f32 %v932
    %vm939 = vmor %vm937, %vm938
    %v940 = vsel %vm939, %v932, %v936
    %v941 = vand.u32 2147483647, %v901
    %vm942 = vcmp.eq.f32.partialorder %v941, 8.507059e+37
    %v943 = vand.u32 %v901, 2147483648
    %v944 = vor.u32 1.1754944e-38, %v943
    %v945 = vsel %vm942, %v944, %v940
    %v946 = vmul.f32 1.0, %v945
    %v947 = vtanh.pop %v889
    %v949 = vrot.slane %v788, 7
    %v951 = vmul.f32 %v931, %v949
    %v952 = vmul.f32 %v916, %v947
    %v953 = vadd.f32 %v951, %v952
    %v954 = vtanh.pop %v953
    %v955 = vmul.f32 %v946, %v954
    %v957 = vrot.slane %v955, 3
    %959 = vmatpush.msra.mxu0 %v313
    %960 = vmatpush.msra.mxu0 %v309
    %961 = vmatpush.msra.mxu0 %v305
    %962 = vmatpush.msra.mxu0 %v301
    %963 = vmatpush.msra.mxu0 %v297
    %964 = vmatpush.msra.mxu0 %v293
    %965 = vmatpush.msra.mxu0 %v289
    %966 = vmatpush.msra.mxu0 %v285
    %967 = vmatpush.msra.mxu0 %v281
    %968 = vmatpush.msra.mxu0 %v277
    %969 = vmatpush.msra.mxu0 %v273
    %970 = vmatpush.msra.mxu0 %v269
    %971 = vmatpush.msra.mxu0 %v265
    %972 = vmatpush.msra.mxu0 %v261
    %973 = vmatpush.msra.mxu0 %v257
    %974 = vmatpush.msra.mxu0 %v253
    %975 = vmatmul.f32.gmra.mxu0 %v957
    %v976 = vpop.f32.mrf.mxu0
    %v977 = vadd.f32 0.0, %v976
    %978 = vdwg.mxu0
    %979 = vmatpush.msra.mxu0 %v314
    %980 = vmatpush.msra.mxu0 %v310
    %981 = vmatpush.msra.mxu0 %v306
    %982 = vmatpush.msra.mxu0 %v302
    %983 = vmatpush.msra.mxu0 %v298
    %984 = vmatpush.msra.mxu0 %v294
    %985 = vmatpush.msra.mxu0 %v290
    %986 = vmatpush.msra.mxu0 %v286
    %987 = vmatpush.msra.mxu0 %v282
    %988 = vmatpush.msra.mxu0 %v278
    %989 = vmatpush.msra.mxu0 %v274
    %990 = vmatpush.msra.mxu0 %v270
    %991 = vmatpush.msra.mxu0 %v266
    %992 = vmatpush.msra.mxu0 %v262
    %993 = vmatpush.msra.mxu0 %v258
    %994 = vmatpush.msra.mxu0 %v254
    %995 = vmatmul.f32.gmra.mxu0 %v957
    %v996 = vpop.f32.mrf.mxu0
    %v997 = vadd.f32 0.0, %v996
    %998 = vdwg.mxu0
    %999 = vmatpush.msra.mxu0 %v315
    %1000 = vmatpush.msra.mxu0 %v311
    %1001 = vmatpush.msra.mxu0 %v307
    %1002 = vmatpush.msra.mxu0 %v303
    %1003 = vmatpush.msra.mxu0 %v299
    %1004 = vmatpush.msra.mxu0 %v295
    %1005 = vmatpush.msra.mxu0 %v291
    %1006 = vmatpush.msra.mxu0 %v287
    %1007 = vmatpush.msra.mxu0 %v283
    %1008 = vmatpush.msra.mxu0 %v279
    %1009 = vmatpush.msra.mxu0 %v275
    %1010 = vmatpush.msra.mxu0 %v271
    %1011 = vmatpush.msra.mxu0 %v267
    %1012 = vmatpush.msra.mxu0 %v263
    %1013 = vmatpush.msra.mxu0 %v259
    %1014 = vmatpush.msra.mxu0 %v255
    %1015 = vmatmul.f32.gmra.mxu0 %v957
    %v1016 = vpop.f32.mrf.mxu0
    %v1017 = vadd.f32 0.0, %v1016
    %1018 = vdwg.mxu0
    %1019 = vmatpush.msra.mxu0 %v316
    %1020 = vmatpush.msra.mxu0 %v312
    %1021 = vmatpush.msra.mxu0 %v308
    %1022 = vmatpush.msra.mxu0 %v304
    %1023 = vmatpush.msra.mxu0 %v300
    %1024 = vmatpush.msra.mxu0 %v296
    %1025 = vmatpush.msra.mxu0 %v292
    %1026 = vmatpush.msra.mxu0 %v288
    %1027 = vmatpush.msra.mxu0 %v284
    %1028 = vmatpush.msra.mxu0 %v280
    %1029 = vmatpush.msra.mxu0 %v276
    %1030 = vmatpush.msra.mxu0 %v272
    %1031 = vmatpush.msra.mxu0 %v268
    %1032 = vmatpush.msra.mxu0 %v264
    %1033 = vmatpush.msra.mxu0 %v260
    %1034 = vmatpush.msra.mxu0 %v256
    %1035 = vmatmul.f32.gmra.mxu0 %v957
    %v1036 = vpop.f32.mrf.mxu0
    %v1037 = vadd.f32 0.0, %v1036
    %1038 = vdwg.mxu0
    %v1043 = vrot.slane %v977, 4
    %v1044 = vrot.slane %v997, 4
    %v1045 = vrot.slane %v1017, 4
    %v1046 = vrot.slane %v1037, 4
    %v1051 = vadd.f32 %v191, %v1043
    %v1052 = vadd.f32 %v211, %v1044
    %v1053 = vadd.f32 %v231, %v1045
    %v1054 = vadd.f32 %v251, %v1046
    %v1055 = vxor.u32 %v1051, 2147483648
    %v1056 = vxor.u32 %v1052, 2147483648
    %v1057 = vxor.u32 %v1053, 2147483648
    %v1058 = vmul.f32 %v1055, 1.442695
    %v1059 = vpow.pop %v1058
    %v1060 = vmul.f32 %v1056, 1.442695
    %v1061 = vpow.pop %v1060
    %v1062 = vmul.f32 %v1057, 1.442695
    %v1063 = vpow.pop %v1062
    %v1064 = vadd.f32 %v1059, 1.0
    %v1065 = vadd.f32 %v1061, 1.0
    %v1066 = vadd.f32 %v1063, 1.0
    %v1067 = vrcp.pop %v1064
    %v1068 = vmul.f32 %v1064, %v1067
    %v1069 = vsub.f32 1.0, %v1068
    %v1070 = vmul.f32 %v1067, %v1069
    %v1071 = vadd.f32 %v1067, %v1070
    %vm1072 = vweird.f32 %v1064
    %vm1073 = vweird.f32 %v1067
    %vm1074 = vmor %vm1072, %vm1073
    %v1075 = vsel %vm1074, %v1067, %v1071
    %v1076 = vand.u32 2147483647, %v1064
    %vm1077 = vcmp.eq.f32.partialorder %v1076, 8.507059e+37
    %v1078 = vand.u32 %v1064, 2147483648
    %v1079 = vor.u32 1.1754944e-38, %v1078
    %v1080 = vsel %vm1077, %v1079, %v1075
    %v1081 = vmul.f32 1.0, %v1080
    %v1082 = vrcp.pop %v1065
    %v1083 = vmul.f32 %v1065, %v1082
    %v1084 = vsub.f32 1.0, %v1083
    %v1085 = vmul.f32 %v1082, %v1084
    %v1086 = vadd.f32 %v1082, %v1085
    %vm1087 = vweird.f32 %v1065
    %vm1088 = vweird.f32 %v1082
    %vm1089 = vmor %vm1087, %vm1088
    %v1090 = vsel %vm1089, %v1082, %v1086
    %v1091 = vand.u32 2147483647, %v1065
    %vm1092 = vcmp.eq.f32.partialorder %v1091, 8.507059e+37
    %v1093 = vand.u32 %v1065, 2147483648
    %v1094 = vor.u32 1.1754944e-38, %v1093
    %v1095 = vsel %vm1092, %v1094, %v1090
    %v1096 = vmul.f32 1.0, %v1095
    %v1097 = vrcp.pop %v1066
    %v1098 = vmul.f32 %v1066, %v1097
    %v1099 = vsub.f32 1.0, %v1098
    %v1100 = vmul.f32 %v1097, %v1099
    %v1101 = vadd.f32 %v1097, %v1100
    %vm1102 = vweird.f32 %v1066
    %vm1103 = vweird.f32 %v1097
    %vm1104 = vmor %vm1102, %vm1103
    %v1105 = vsel %vm1104, %v1097, %v1101
    %v1106 = vand.u32 2147483647, %v1066
    %vm1107 = vcmp.eq.f32.partialorder %v1106, 8.507059e+37
    %v1108 = vand.u32 %v1066, 2147483648
    %v1109 = vor.u32 1.1754944e-38, %v1108
    %v1110 = vsel %vm1107, %v1109, %v1105
    %v1111 = vmul.f32 1.0, %v1110
    %v1112 = vtanh.pop %v1054
    %v1114 = vrot.slane %v953, 7
    %v1116 = vmul.f32 %v1096, %v1114
    %v1117 = vmul.f32 %v1081, %v1112
    %v1118 = vadd.f32 %v1116, %v1117
    %v1119 = vtanh.pop %v1118
    %v1120 = vmul.f32 %v1111, %v1119
    %v1122 = vrot.slane %v1120, 4
    %1124 = vmatpush.msra.mxu0 %v313
    %1125 = vmatpush.msra.mxu0 %v309
    %1126 = vmatpush.msra.mxu0 %v305
    %1127 = vmatpush.msra.mxu0 %v301
    %1128 = vmatpush.msra.mxu0 %v297
    %1129 = vmatpush.msra.mxu0 %v293
    %1130 = vmatpush.msra.mxu0 %v289
    %1131 = vmatpush.msra.mxu0 %v285
    %1132 = vmatpush.msra.mxu0 %v281
    %1133 = vmatpush.msra.mxu0 %v277
    %1134 = vmatpush.msra.mxu0 %v273
    %1135 = vmatpush.msra.mxu0 %v269
    %1136 = vmatpush.msra.mxu0 %v265
    %1137 = vmatpush.msra.mxu0 %v261
    %1138 = vmatpush.msra.mxu0 %v257
    %1139 = vmatpush.msra.mxu0 %v253
    %1140 = vmatmul.f32.gmra.mxu0 %v1122
    %v1141 = vpop.f32.mrf.mxu0
    %v1142 = vadd.f32 0.0, %v1141
    %1143 = vdwg.mxu0
    %1144 = vmatpush.msra.mxu0 %v314
    %1145 = vmatpush.msra.mxu0 %v310
    %1146 = vmatpush.msra.mxu0 %v306
    %1147 = vmatpush.msra.mxu0 %v302
    %1148 = vmatpush.msra.mxu0 %v298
    %1149 = vmatpush.msra.mxu0 %v294
    %1150 = vmatpush.msra.mxu0 %v290
    %1151 = vmatpush.msra.mxu0 %v286
    %1152 = vmatpush.msra.mxu0 %v282
    %1153 = vmatpush.msra.mxu0 %v278
    %1154 = vmatpush.msra.mxu0 %v274
    %1155 = vmatpush.msra.mxu0 %v270
    %1156 = vmatpush.msra.mxu0 %v266
    %1157 = vmatpush.msra.mxu0 %v262
    %1158 = vmatpush.msra.mxu0 %v258
    %1159 = vmatpush.msra.mxu0 %v254
    %1160 = vmatmul.f32.gmra.mxu0 %v1122
    %v1161 = vpop.f32.mrf.mxu0
    %v1162 = vadd.f32 0.0, %v1161
    %1163 = vdwg.mxu0
    %1164 = vmatpush.msra.mxu0 %v315
    %1165 = vmatpush.msra.mxu0 %v311
    %1166 = vmatpush.msra.mxu0 %v307
    %1167 = vmatpush.msra.mxu0 %v303
    %1168 = vmatpush.msra.mxu0 %v299
    %1169 = vmatpush.msra.mxu0 %v295
    %1170 = vmatpush.msra.mxu0 %v291
    %1171 = vmatpush.msra.mxu0 %v287
    %1172 = vmatpush.msra.mxu0 %v283
    %1173 = vmatpush.msra.mxu0 %v279
    %1174 = vmatpush.msra.mxu0 %v275
    %1175 = vmatpush.msra.mxu0 %v271
    %1176 = vmatpush.msra.mxu0 %v267
    %1177 = vmatpush.msra.mxu0 %v263
    %1178 = vmatpush.msra.mxu0 %v259
    %1179 = vmatpush.msra.mxu0 %v255
    %1180 = vmatmul.f32.gmra.mxu0 %v1122
    %v1181 = vpop.f32.mrf.mxu0
    %v1182 = vadd.f32 0.0, %v1181
    %1183 = vdwg.mxu0
    %1184 = vmatpush.msra.mxu0 %v316
    %1185 = vmatpush.msra.mxu0 %v312
    %1186 = vmatpush.msra.mxu0 %v308
    %1187 = vmatpush.msra.mxu0 %v304
    %1188 = vmatpush.msra.mxu0 %v300
    %1189 = vmatpush.msra.mxu0 %v296
    %1190 = vmatpush.msra.mxu0 %v292
    %1191 = vmatpush.msra.mxu0 %v288
    %1192 = vmatpush.msra.mxu0 %v284
    %1193 = vmatpush.msra.mxu0 %v280
    %1194 = vmatpush.msra.mxu0 %v276
    %1195 = vmatpush.msra.mxu0 %v272
    %1196 = vmatpush.msra.mxu0 %v268
    %1197 = vmatpush.msra.mxu0 %v264
    %1198 = vmatpush.msra.mxu0 %v260
    %1199 = vmatpush.msra.mxu0 %v256
    %1200 = vmatmul.f32.gmra.mxu0 %v1122
    %v1201 = vpop.f32.mrf.mxu0
    %v1202 = vadd.f32 0.0, %v1201
    %1203 = vdwg.mxu0
    %v1208 = vrot.slane %v1142, 3
    %v1209 = vrot.slane %v1162, 3
    %v1210 = vrot.slane %v1182, 3
    %v1211 = vrot.slane %v1202, 3
    %v1216 = vadd.f32 %v191, %v1208
    %v1217 = vadd.f32 %v211, %v1209
    %v1218 = vadd.f32 %v231, %v1210
    %v1219 = vadd.f32 %v251, %v1211
    %v1220 = vxor.u32 %v1216, 2147483648
    %v1221 = vxor.u32 %v1217, 2147483648
    %v1222 = vxor.u32 %v1218, 2147483648
    %v1223 = vmul.f32 %v1220, 1.442695
    %v1224 = vpow.pop %v1223
    %v1225 = vmul.f32 %v1221, 1.442695
    %v1226 = vpow.pop %v1225
    %v1227 = vmul.f32 %v1222, 1.442695
    %v1228 = vpow.pop %v1227
    %v1229 = vadd.f32 %v1224, 1.0
    %v1230 = vadd.f32 %v1226, 1.0
    %v1231 = vadd.f32 %v1228, 1.0
    %v1232 = vrcp.pop %v1229
    %v1233 = vmul.f32 %v1229, %v1232
    %v1234 = vsub.f32 1.0, %v1233
    %v1235 = vmul.f32 %v1232, %v1234
    %v1236 = vadd.f32 %v1232, %v1235
    %vm1237 = vweird.f32 %v1229
    %vm1238 = vweird.f32 %v1232
    %vm1239 = vmor %vm1237, %vm1238
    %v1240 = vsel %vm1239, %v1232, %v1236
    %v1241 = vand.u32 2147483647, %v1229
    %vm1242 = vcmp.eq.f32.partialorder %v1241, 8.507059e+37
    %v1243 = vand.u32 %v1229, 2147483648
    %v1244 = vor.u32 1.1754944e-38, %v1243
    %v1245 = vsel %vm1242, %v1244, %v1240
    %v1246 = vmul.f32 1.0, %v1245
    %v1247 = vrcp.pop %v1230
    %v1248 = vmul.f32 %v1230, %v1247
    %v1249 = vsub.f32 1.0, %v1248
    %v1250 = vmul.f32 %v1247, %v1249
    %v1251 = vadd.f32 %v1247, %v1250
    %vm1252 = vweird.f32 %v1230
    %vm1253 = vweird.f32 %v1247
    %vm1254 = vmor %vm1252, %vm1253
    %v1255 = vsel %vm1254, %v1247, %v1251
    %v1256 = vand.u32 2147483647, %v1230
    %vm1257 = vcmp.eq.f32.partialorder %v1256, 8.507059e+37
    %v1258 = vand.u32 %v1230, 2147483648
    %v1259 = vor.u32 1.1754944e-38, %v1258
    %v1260 = vsel %vm1257, %v1259, %v1255
    %v1261 = vmul.f32 1.0, %v1260
    %v1262 = vrcp.pop %v1231
    %v1263 = vmul.f32 %v1231, %v1262
    %v1264 = vsub.f32 1.0, %v1263
    %v1265 = vmul.f32 %v1262, %v1264
    %v1266 = vadd.f32 %v1262, %v1265
    %vm1267 = vweird.f32 %v1231
    %vm1268 = vweird.f32 %v1262
    %vm1269 = vmor %vm1267, %vm1268
    %v1270 = vsel %vm1269, %v1262, %v1266
    %v1271 = vand.u32 2147483647, %v1231
    %vm1272 = vcmp.eq.f32.partialorder %v1271, 8.507059e+37
    %v1273 = vand.u32 %v1231, 2147483648
    %v1274 = vor.u32 1.1754944e-38, %v1273
    %v1275 = vsel %vm1272, %v1274, %v1270
    %v1276 = vmul.f32 1.0, %v1275
    %v1277 = vtanh.pop %v1219
    %v1279 = vrot.slane %v1118, 7
    %v1281 = vmul.f32 %v1261, %v1279
    %v1282 = vmul.f32 %v1246, %v1277
    %v1283 = vadd.f32 %v1281, %v1282
    %v1284 = vtanh.pop %v1283
    %v1285 = vmul.f32 %v1276, %v1284
    %v1287 = vrot.slane %v1285, 5
    %1289 = vmatpush.msra.mxu0 %v313
    %1290 = vmatpush.msra.mxu0 %v309
    %1291 = vmatpush.msra.mxu0 %v305
    %1292 = vmatpush.msra.mxu0 %v301
    %1293 = vmatpush.msra.mxu0 %v297
    %1294 = vmatpush.msra.mxu0 %v293
    %1295 = vmatpush.msra.mxu0 %v289
    %1296 = vmatpush.msra.mxu0 %v285
    %1297 = vmatpush.msra.mxu0 %v281
    %1298 = vmatpush.msra.mxu0 %v277
    %1299 = vmatpush.msra.mxu0 %v273
    %1300 = vmatpush.msra.mxu0 %v269
    %1301 = vmatpush.msra.mxu0 %v265
    %1302 = vmatpush.msra.mxu0 %v261
    %1303 = vmatpush.msra.mxu0 %v257
    %1304 = vmatpush.msra.mxu0 %v253
    %1305 = vmatmul.f32.gmra.mxu0 %v1287
    %v1306 = vpop.f32.mrf.mxu0
    %v1307 = vadd.f32 0.0, %v1306
    %1308 = vdwg.mxu0
    %1309 = vmatpush.msra.mxu0 %v314
    %1310 = vmatpush.msra.mxu0 %v310
    %1311 = vmatpush.msra.mxu0 %v306
    %1312 = vmatpush.msra.mxu0 %v302
    %1313 = vmatpush.msra.mxu0 %v298
    %1314 = vmatpush.msra.mxu0 %v294
    %1315 = vmatpush.msra.mxu0 %v290
    %1316 = vmatpush.msra.mxu0 %v286
    %1317 = vmatpush.msra.mxu0 %v282
    %1318 = vmatpush.msra.mxu0 %v278
    %1319 = vmatpush.msra.mxu0 %v274
    %1320 = vmatpush.msra.mxu0 %v270
    %1321 = vmatpush.msra.mxu0 %v266
    %1322 = vmatpush.msra.mxu0 %v262
    %1323 = vmatpush.msra.mxu0 %v258
    %1324 = vmatpush.msra.mxu0 %v254
    %1325 = vmatmul.f32.gmra.mxu0 %v1287
    %v1326 = vpop.f32.mrf.mxu0
    %v1327 = vadd.f32 0.0, %v1326
    %1328 = vdwg.mxu0
    %1329 = vmatpush.msra.mxu0 %v315
    %1330 = vmatpush.msra.mxu0 %v311
    %1331 = vmatpush.msra.mxu0 %v307
    %1332 = vmatpush.msra.mxu0 %v303
    %1333 = vmatpush.msra.mxu0 %v299
    %1334 = vmatpush.msra.mxu0 %v295
    %1335 = vmatpush.msra.mxu0 %v291
    %1336 = vmatpush.msra.mxu0 %v287
    %1337 = vmatpush.msra.mxu0 %v283
    %1338 = vmatpush.msra.mxu0 %v279
    %1339 = vmatpush.msra.mxu0 %v275
    %1340 = vmatpush.msra.mxu0 %v271
    %1341 = vmatpush.msra.mxu0 %v267
    %1342 = vmatpush.msra.mxu0 %v263
    %1343 = vmatpush.msra.mxu0 %v259
    %1344 = vmatpush.msra.mxu0 %v255
    %1345 = vmatmul.f32.gmra.mxu0 %v1287
    %v1346 = vpop.f32.mrf.mxu0
    %v1347 = vadd.f32 0.0, %v1346
    %1348 = vdwg.mxu0
    %1349 = vmatpush.msra.mxu0 %v316
    %1350 = vmatpush.msra.mxu0 %v312
    %1351 = vmatpush.msra.mxu0 %v308
    %1352 = vmatpush.msra.mxu0 %v304
    %1353 = vmatpush.msra.mxu0 %v300
    %1354 = vmatpush.msra.mxu0 %v296
    %1355 = vmatpush.msra.mxu0 %v292
    %1356 = vmatpush.msra.mxu0 %v288
    %1357 = vmatpush.msra.mxu0 %v284
    %1358 = vmatpush.msra.mxu0 %v280
    %1359 = vmatpush.msra.mxu0 %v276
    %1360 = vmatpush.msra.mxu0 %v272
    %1361 = vmatpush.msra.mxu0 %v268
    %1362 = vmatpush.msra.mxu0 %v264
    %1363 = vmatpush.msra.mxu0 %v260
    %1364 = vmatpush.msra.mxu0 %v256
    %1365 = vmatmul.f32.gmra.mxu0 %v1287
    %v1366 = vpop.f32.mrf.mxu0
    %v1367 = vadd.f32 0.0, %v1366
    %1368 = vdwg.mxu0
    %v1373 = vrot.slane %v1307, 2
    %v1374 = vrot.slane %v1327, 2
    %v1375 = vrot.slane %v1347, 2
    %v1376 = vrot.slane %v1367, 2
    %v1381 = vadd.f32 %v191, %v1373
    %v1382 = vadd.f32 %v211, %v1374
    %v1383 = vadd.f32 %v231, %v1375
    %v1384 = vadd.f32 %v251, %v1376
    %v1385 = vxor.u32 %v1381, 2147483648
    %v1386 = vxor.u32 %v1382, 2147483648
    %v1387 = vxor.u32 %v1383, 2147483648
    %v1388 = vmul.f32 %v1385, 1.442695
    %v1389 = vpow.pop %v1388
    %v1390 = vmul.f32 %v1386, 1.442695
    %v1391 = vpow.pop %v1390
    %v1392 = vmul.f32 %v1387, 1.442695
    %v1393 = vpow.pop %v1392
    %v1394 = vadd.f32 %v1389, 1.0
    %v1395 = vadd.f32 %v1391, 1.0
    %v1396 = vadd.f32 %v1393, 1.0
    %v1397 = vrcp.pop %v1394
    %v1398 = vmul.f32 %v1394, %v1397
    %v1399 = vsub.f32 1.0, %v1398
    %v1400 = vmul.f32 %v1397, %v1399
    %v1401 = vadd.f32 %v1397, %v1400
    %vm1402 = vweird.f32 %v1394
    %vm1403 = vweird.f32 %v1397
    %vm1404 = vmor %vm1402, %vm1403
    %v1405 = vsel %vm1404, %v1397, %v1401
    %v1406 = vand.u32 2147483647, %v1394
    %vm1407 = vcmp.eq.f32.partialorder %v1406, 8.507059e+37
    %v1408 = vand.u32 %v1394, 2147483648
    %v1409 = vor.u32 1.1754944e-38, %v1408
    %v1410 = vsel %vm1407, %v1409, %v1405
    %v1411 = vmul.f32 1.0, %v1410
    %v1412 = vrcp.pop %v1395
    %v1413 = vmul.f32 %v1395, %v1412
    %v1414 = vsub.f32 1.0, %v1413
    %v1415 = vmul.f32 %v1412, %v1414
    %v1416 = vadd.f32 %v1412, %v1415
    %vm1417 = vweird.f32 %v1395
    %vm1418 = vweird.f32 %v1412
    %vm1419 = vmor %vm1417, %vm1418
    %v1420 = vsel %vm1419, %v1412, %v1416
    %v1421 = vand.u32 2147483647, %v1395
    %vm1422 = vcmp.eq.f32.partialorder %v1421, 8.507059e+37
    %v1423 = vand.u32 %v1395, 2147483648
    %v1424 = vor.u32 1.1754944e-38, %v1423
    %v1425 = vsel %vm1422, %v1424, %v1420
    %v1426 = vmul.f32 1.0, %v1425
    %v1427 = vrcp.pop %v1396
    %v1428 = vmul.f32 %v1396, %v1427
    %v1429 = vsub.f32 1.0, %v1428
    %v1430 = vmul.f32 %v1427, %v1429
    %v1431 = vadd.f32 %v1427, %v1430
    %vm1432 = vweird.f32 %v1396
    %vm1433 = vweird.f32 %v1427
    %vm1434 = vmor %vm1432, %vm1433
    %v1435 = vsel %vm1434, %v1427, %v1431
    %v1436 = vand.u32 2147483647, %v1396
    %vm1437 = vcmp.eq.f32.partialorder %v1436, 8.507059e+37
    %v1438 = vand.u32 %v1396, 2147483648
    %v1439 = vor.u32 1.1754944e-38, %v1438
    %v1440 = vsel %vm1437, %v1439, %v1435
    %v1441 = vmul.f32 1.0, %v1440
    %v1442 = vtanh.pop %v1384
    %v1444 = vrot.slane %v1283, 7
    %v1446 = vmul.f32 %v1426, %v1444
    %v1447 = vmul.f32 %v1411, %v1442
    %v1448 = vadd.f32 %v1446, %v1447
    %v1449 = vtanh.pop %v1448
    %v1450 = vmul.f32 %v1441, %v1449
    %v1452 = vrot.slane %v1450, 6
    %1454 = vmatpush.msra.mxu0 %v313
    %1455 = vmatpush.msra.mxu0 %v309
    %1456 = vmatpush.msra.mxu0 %v305
    %1457 = vmatpush.msra.mxu0 %v301
    %1458 = vmatpush.msra.mxu0 %v297
    %1459 = vmatpush.msra.mxu0 %v293
    %1460 = vmatpush.msra.mxu0 %v289
    %1461 = vmatpush.msra.mxu0 %v285
    %1462 = vmatpush.msra.mxu0 %v281
    %1463 = vmatpush.msra.mxu0 %v277
    %1464 = vmatpush.msra.mxu0 %v273
    %1465 = vmatpush.msra.mxu0 %v269
    %1466 = vmatpush.msra.mxu0 %v265
    %1467 = vmatpush.msra.mxu0 %v261
    %1468 = vmatpush.msra.mxu0 %v257
    %1469 = vmatpush.msra.mxu0 %v253
    %1470 = vmatmul.f32.gmra.mxu0 %v1452
    %v1471 = vpop.f32.mrf.mxu0
    %v1472 = vadd.f32 0.0, %v1471
    %1473 = vdwg.mxu0
    %1474 = vmatpush.msra.mxu0 %v314
    %1475 = vmatpush.msra.mxu0 %v310
    %1476 = vmatpush.msra.mxu0 %v306
    %1477 = vmatpush.msra.mxu0 %v302
    %1478 = vmatpush.msra.mxu0 %v298
    %1479 = vmatpush.msra.mxu0 %v294
    %1480 = vmatpush.msra.mxu0 %v290
    %1481 = vmatpush.msra.mxu0 %v286
    %1482 = vmatpush.msra.mxu0 %v282
    %1483 = vmatpush.msra.mxu0 %v278
    %1484 = vmatpush.msra.mxu0 %v274
    %1485 = vmatpush.msra.mxu0 %v270
    %1486 = vmatpush.msra.mxu0 %v266
    %1487 = vmatpush.msra.mxu0 %v262
    %1488 = vmatpush.msra.mxu0 %v258
    %1489 = vmatpush.msra.mxu0 %v254
    %1490 = vmatmul.f32.gmra.mxu0 %v1452
    %v1491 = vpop.f32.mrf.mxu0
    %v1492 = vadd.f32 0.0, %v1491
    %1493 = vdwg.mxu0
    %1494 = vmatpush.msra.mxu0 %v315
    %1495 = vmatpush.msra.mxu0 %v311
    %1496 = vmatpush.msra.mxu0 %v307
    %1497 = vmatpush.msra.mxu0 %v303
    %1498 = vmatpush.msra.mxu0 %v299
    %1499 = vmatpush.msra.mxu0 %v295
    %1500 = vmatpush.msra.mxu0 %v291
    %1501 = vmatpush.msra.mxu0 %v287
    %1502 = vmatpush.msra.mxu0 %v283
    %1503 = vmatpush.msra.mxu0 %v279
    %1504 = vmatpush.msra.mxu0 %v275
    %1505 = vmatpush.msra.mxu0 %v271
    %1506 = vmatpush.msra.mxu0 %v267
    %1507 = vmatpush.msra.mxu0 %v263
    %1508 = vmatpush.msra.mxu0 %v259
    %1509 = vmatpush.msra.mxu0 %v255
    %1510 = vmatmul.f32.gmra.mxu0 %v1452
    %v1511 = vpop.f32.mrf.mxu0
    %v1512 = vadd.f32 0.0, %v1511
    %1513 = vdwg.mxu0
    %1514 = vmatpush.msra.mxu0 %v316
    %1515 = vmatpush.msra.mxu0 %v312
    %1516 = vmatpush.msra.mxu0 %v308
    %1517 = vmatpush.msra.mxu0 %v304
    %1518 = vmatpush.msra.mxu0 %v300
    %1519 = vmatpush.msra.mxu0 %v296
    %1520 = vmatpush.msra.mxu0 %v292
    %1521 = vmatpush.msra.mxu0 %v288
    %1522 = vmatpush.msra.mxu0 %v284
    %1523 = vmatpush.msra.mxu0 %v280
    %1524 = vmatpush.msra.mxu0 %v276
    %1525 = vmatpush.msra.mxu0 %v272
    %1526 = vmatpush.msra.mxu0 %v268
    %1527 = vmatpush.msra.mxu0 %v264
    %1528 = vmatpush.msra.mxu0 %v260
    %1529 = vmatpush.msra.mxu0 %v256
    %1530 = vmatmul.f32.gmra.mxu0 %v1452
    %v1531 = vpop.f32.mrf.mxu0
    %v1532 = vadd.f32 0.0, %v1531
    %1533 = vdwg.mxu0
    %v1538 = vrot.slane %v1472, 1
    %v1539 = vrot.slane %v1492, 1
    %v1540 = vrot.slane %v1512, 1
    %v1541 = vrot.slane %v1532, 1
    %v1546 = vadd.f32 %v191, %v1538
    %v1547 = vadd.f32 %v211, %v1539
    %v1548 = vadd.f32 %v231, %v1540
    %v1549 = vadd.f32 %v251, %v1541
    %v1550 = vxor.u32 %v1546, 2147483648
    %v1551 = vxor.u32 %v1547, 2147483648
    %v1552 = vxor.u32 %v1548, 2147483648
    %v1553 = vmul.f32 %v1550, 1.442695
    %v1554 = vpow.pop %v1553
    %v1555 = vmul.f32 %v1551, 1.442695
    %v1556 = vpow.pop %v1555
    %v1557 = vmul.f32 %v1552, 1.442695
    %v1558 = vpow.pop %v1557
    %v1559 = vadd.f32 %v1554, 1.0
    %v1560 = vadd.f32 %v1556, 1.0
    %v1561 = vadd.f32 %v1558, 1.0
    %v1562 = vrcp.pop %v1559
    %v1563 = vmul.f32 %v1559, %v1562
    %v1564 = vsub.f32 1.0, %v1563
    %v1565 = vmul.f32 %v1562, %v1564
    %v1566 = vadd.f32 %v1562, %v1565
    %vm1567 = vweird.f32 %v1559
    %vm1568 = vweird.f32 %v1562
    %vm1569 = vmor %vm1567, %vm1568
    %v1570 = vsel %vm1569, %v1562, %v1566
    %v1571 = vand.u32 2147483647, %v1559
    %vm1572 = vcmp.eq.f32.partialorder %v1571, 8.507059e+37
    %v1573 = vand.u32 %v1559, 2147483648
    %v1574 = vor.u32 1.1754944e-38, %v1573
    %v1575 = vsel %vm1572, %v1574, %v1570
    %v1576 = vmul.f32 1.0, %v1575
    %v1577 = vrcp.pop %v1560
    %v1578 = vmul.f32 %v1560, %v1577
    %v1579 = vsub.f32 1.0, %v1578
    %v1580 = vmul.f32 %v1577, %v1579
    %v1581 = vadd.f32 %v1577, %v1580
    %vm1582 = vweird.f32 %v1560
    %vm1583 = vweird.f32 %v1577
    %vm1584 = vmor %vm1582, %vm1583
    %v1585 = vsel %vm1584, %v1577, %v1581
    %v1586 = vand.u32 2147483647, %v1560
    %vm1587 = vcmp.eq.f32.partialorder %v1586, 8.507059e+37
    %v1588 = vand.u32 %v1560, 2147483648
    %v1589 = vor.u32 1.1754944e-38, %v1588
    %v1590 = vsel %vm1587, %v1589, %v1585
    %v1591 = vmul.f32 1.0, %v1590
    %v1592 = vrcp.pop %v1561
    %v1593 = vmul.f32 %v1561, %v1592
    %v1594 = vsub.f32 1.0, %v1593
    %v1595 = vmul.f32 %v1592, %v1594
    %v1596 = vadd.f32 %v1592, %v1595
    %vm1597 = vweird.f32 %v1561
    %vm1598 = vweird.f32 %v1592
    %vm1599 = vmor %vm1597, %vm1598
    %v1600 = vsel %vm1599, %v1592, %v1596
    %v1601 = vand.u32 2147483647, %v1561
    %vm1602 = vcmp.eq.f32.partialorder %v1601, 8.507059e+37
    %v1603 = vand.u32 %v1561, 2147483648
    %v1604 = vor.u32 1.1754944e-38, %v1603
    %v1605 = vsel %vm1602, %v1604, %v1600
    %v1606 = vmul.f32 1.0, %v1605
    %v1607 = vtanh.pop %v1549
    %v1609 = vrot.slane %v1448, 7
    %v1611 = vmul.f32 %v1591, %v1609
    %v1612 = vmul.f32 %v1576, %v1607
    %v1613 = vadd.f32 %v1611, %v1612
    %v1614 = vtanh.pop %v1613
    %v1615 = vmul.f32 %v1606, %v1614
    %v1616 = vld [vmem:[#allocation10] sm:$0xff]
    %v1617 = vld [vmem:[#allocation10 + $0x8] sm:$0xff]
    %v1618 = vld [vmem:[#allocation10 + $0x10] sm:$0xff]
    %v1619 = vld [vmem:[#allocation10 + $0x18] sm:$0xff]
    %v1620 = vld [vmem:[#allocation10 + $0x20] sm:$0xff]
    %v1621 = vld [vmem:[#allocation10 + $0x28] sm:$0xff]
    %v1622 = vld [vmem:[#allocation10 + $0x30] sm:$0xff]
    %v1623 = vld [vmem:[#allocation10 + $0x38] sm:$0xff]
    %v1624 = vld [vmem:[#allocation10 + $0x40] sm:$0xff]
    %v1625 = vld [vmem:[#allocation10 + $0x48] sm:$0xff]
    %v1626 = vld [vmem:[#allocation10 + $0x50] sm:$0xff]
    %v1627 = vld [vmem:[#allocation10 + $0x58] sm:$0xff]
    %v1628 = vld [vmem:[#allocation10 + $0x60] sm:$0xff]
    %v1629 = vld [vmem:[#allocation10 + $0x68] sm:$0xff]
    %v1630 = vld [vmem:[#allocation10 + $0x70] sm:$0xff]
    %v1631 = vld [vmem:[#allocation10 + $0x78] sm:$0xff]
    %v1632 = vld [vmem:[%s5] sm:$0x1]
    %v1634 = vrot.slane %v1615, 7
    %1636 = vmatpush.msra.mxu0 %v1631
    %1637 = vmatpush.msra.mxu0 %v1630
    %1638 = vmatpush.msra.mxu0 %v1629
    %1639 = vmatpush.msra.mxu0 %v1628
    %1640 = vmatpush.msra.mxu0 %v1627
    %1641 = vmatpush.msra.mxu0 %v1626
    %1642 = vmatpush.msra.mxu0 %v1625
    %1643 = vmatpush.msra.mxu0 %v1624
    %1644 = vmatpush.msra.mxu0 %v1623
    %1645 = vmatpush.msra.mxu0 %v1622
    %1646 = vmatpush.msra.mxu0 %v1621
    %1647 = vmatpush.msra.mxu0 %v1620
    %1648 = vmatpush.msra.mxu0 %v1619
    %1649 = vmatpush.msra.mxu0 %v1618
    %1650 = vmatpush.msra.mxu0 %v1617
    %1651 = vmatpush.msra.mxu0 %v1616
    %1652 = vmatmul.f32.gmra.mxu0 %v1634
    %v1653 = vpop.f32.mrf.mxu0
    %v1654 = vadd.f32 %v1632, %v1653
    %1655 = vdwg.mxu0
    %1656 = vst [vmem:[#allocation11] sm:$0x1] %v1654
    // Predicated region
    $region46: #{tpu_custom_call.1} parent=1 // pred_check
      _
    $region47: #{tpu_custom_call.1} parent=1 // pred_check_branch
      %1658 = sbr.rel (0) target = $region49
    $region48: #{tpu_custom_call.1} parent=1 // pred_region
      %1660 = vsyncadd [#allocation4], 0
      %s1662 = sshll.u32 [#allocation11], 4
      %s1663 = int_to_ptr.vmem [resolvable:$true] %s1662
      %s1664 = sshll.u32 %s6, 4
      %s1665 = int_to_ptr.hbm [resolvable:$true] %s1664
      %1667 = dma.vmem_to_hbm [thread:$0]  %s1663, 16, %s1665, [#allocation4]
    $region49: #{tpu_custom_call.1} parent=1 // pred_fallthru
      _
    // Predicated region
    $region50: #{tpu_custom_call.1} parent=1 // pred_check
      _
    $region51: #{tpu_custom_call.1} parent=1 // pred_check_branch
      %1669 = sbr.rel (0) target = $region53
    $region52: #{tpu_custom_call.1} parent=1 // pred_region
      %1671 = dma.done [#allocation4], 16
    $region53: #{tpu_custom_call.1} parent=1 // pred_fallthru
      _
    %1672 = vsyncpa [#allocation3], 1
    %1673 = vsyncpa [#allocation6], 1
    %1674 = vsyncpa [#allocation9], 1
    %1675 = vsyncpa [#allocation4], 1

</llo_original>
